<compile_context>
chip_gen: v7x
topology: tpu7x:2x2x1
jax: 0.10.0
libtpu: 0.0.40
codegen_flags: <defaults>
</compile_context>

<pallas_src>
import jax
import jax.numpy as jnp
from jax.experimental import pallas as pl
from jax.experimental.pallas import tpu as pltpu

BN_EPS = 1e-5
_VMEM_LIMIT = 32 * 1024 * 1024  # safe on v5e/v6e (128 MiB) and v7x (64 MiB physical)


# --------------------------- Pallas kernels ---------------------------------

def _deconv1_kernel(w_ref, p_ref, o_ref):
    # w: (4*Co1, Ci*4 + 1)  -- bias folded into the last column
    # p: (Ci*4 + 1, M1)     -- last row = ones
    # o: (4*Co1, M1)        -- M1 = B*Q*R is the lane (fast) axis -> dense stores
    o_ref[...] = jnp.dot(w_ref[...], p_ref[...], preferred_element_type=jnp.float32)


def _deconv2_bn_kernel(w_ref, p_ref, gb_ref, o_ref):
    # w: (Co2, Ci2*9), p: (Ci2*9, M2), gb: (Co2, 2) = [gamma | beta], o: (Co2, M2)
    # Conv-as-matmul fused with training-mode BatchNorm over the M axis (= N*H*W per channel).
    # Rows are channels, so mean/var are lane reductions (XLU), not long sublane reductions.
    y = jnp.dot(w_ref[...], p_ref[...], preferred_element_type=jnp.float32)
    mean = jnp.mean(y, axis=1, keepdims=True)
    var = jnp.mean(jnp.square(y - mean), axis=1, keepdims=True)
    scale = jax.lax.rsqrt(var + BN_EPS) * gb_ref[:, 0:1]
    o_ref[...] = (y - mean) * scale + gb_ref[:, 1:2]


def _pallas_matmul(w, p):
    n, m = w.shape[0], p.shape[1]
    return pl.pallas_call(
        _deconv1_kernel,
        out_shape=jax.ShapeDtypeStruct((n, m), jnp.float32),
        in_specs=[pl.BlockSpec(memory_space=pltpu.MemorySpace.VMEM)] * 2,
        out_specs=pl.BlockSpec(memory_space=pltpu.MemorySpace.VMEM),
        compiler_params=pltpu.CompilerParams(vmem_limit_bytes=_VMEM_LIMIT),
    )(w, p)


def _pallas_matmul_bn(w, p, gb):
    n, m = w.shape[0], p.shape[1]
    return pl.pallas_call(
        _deconv2_bn_kernel,
        out_shape=jax.ShapeDtypeStruct((n, m), jnp.float32),
        in_specs=[pl.BlockSpec(memory_space=pltpu.MemorySpace.VMEM)] * 3,
        out_specs=pl.BlockSpec(memory_space=pltpu.MemorySpace.VMEM),
        compiler_params=pltpu.CompilerParams(vmem_limit_bytes=_VMEM_LIMIT),
    )(w, p, gb)


# --------------------------- plain-JAX glue ----------------------------------

def _deconv1_patches(x):
    """Sub-pixel-phase im2col for ConvTranspose2d(stride=2, K=4) -- non-zero taps only.

    Every output parity (py, px) is a 2x2 correlation of the 1-padded input, so the patch
    matrix has Ci*4 rows instead of the Ci*16 mostly-zero rows of a zero-dilated im2col.
    Returns ((Ci*4 + 1, B*Q*R) with trailing ones-row for the bias, (B, Q, R)).
    """
    B, C, H, W = x.shape
    Q, R = H + 1, W + 1
    xp = jnp.pad(x, ((0, 0), (0, 0), (1, 1), (1, 1)))
    taps = [xp[:, :, a:a + Q, c:c + R] for a in range(2) for c in range(2)]
    p = jnp.stack(taps, axis=2)              # (B, C, 4, Q, R)
    p = p.transpose(1, 2, 0, 3, 4)           # (C, 4, B, Q, R)
    p = p.reshape(C * 4, B * Q * R)
    ones = jnp.ones((1, B * Q * R), p.dtype)
    return jnp.concatenate([p, ones], axis=0), (B, Q, R)


def _deconv1_weight(w1, b1):
    """ConvTranspose weight (Ci, Co, 4, 4) + bias -> augmented phase matrix (4*Co, Ci*4 + 1).

    Row = (py*2+px)*Co + co, col = ci*4 + a*2 + c, value = w1[ci, co, 2*(1-a)+py, 2*(1-c)+px];
    the last column holds the bias (paired with the ones-row of the patches).
    """
    Ci, Co = w1.shape[0], w1.shape[1]
    w = w1.reshape(Ci, Co, 2, 2, 2, 2)       # (ci, co, a, py, c, px) with kh = 2a+py, kw = 2c+px
    w = w[:, :, ::-1, :, ::-1, :]            # flip the within-phase taps
    w = w.transpose(3, 5, 1, 0, 2, 4)        # (py, px, co, ci, a, c)
    w = w.reshape(4 * Co, Ci * 4)
    return jnp.concatenate([w, jnp.tile(b1, 4)[:, None]], axis=1)


def _interleave_phases(o1, B, Co, Q, R):
    """Phase outputs (4*Co, B*Q*R) -> NCHW (B, Co, 2Q, 2R)."""
    o1 = o1.reshape(2, 2, Co, B, Q, R)       # (py, px, co, b, q, r)
    o1 = o1.transpose(3, 2, 4, 0, 5, 1)      # (b, co, q, py, r, px)
    return o1.reshape(B, Co, 2 * Q, 2 * R)


def _deconv2_patches(v1):
    """im2col for ConvTranspose2d(stride=1, K=3) == 'full' correlation (pad K-1 = 2)."""
    B, C, H, W = v1.shape
    OH, OW = H + 2, W + 2
    vp = jnp.pad(v1, ((0, 0), (0, 0), (2, 2), (2, 2)))
    taps = [vp[:, :, i:i + OH, j:j + OW] for i in range(3) for j in range(3)]
    p = jnp.stack(taps, axis=2)              # (B, C, 9, OH, OW)
    p = p.transpose(1, 2, 0, 3, 4)           # (C, 9, B, OH, OW)
    return p.reshape(C * 9, B * OH * OW), (B, OH, OW)


def _deconv2_weight(w2):
    """ConvTranspose weight (Ci, Co, 3, 3) -> spatially-flipped matmul matrix (Co, Ci*9)."""
    Ci, Co = w2.shape[0], w2.shape[1]
    wf = w2[:, :, ::-1, ::-1]
    return wf.transpose(1, 0, 2, 3).reshape(Co, Ci * 9)


def model_forward(x, params):
    # deconv1: ConvTranspose2d(4, 3, 4, stride=2) via 4 sub-pixel phases (no zero dilation).
    p1, (B, Q, R) = _deconv1_patches(x)
    w1 = _deconv1_weight(params["w1"], params["b1"])
    Co1 = params["w1"].shape[1]
    o1 = _pallas_matmul(w1, p1)                                  # (4*Co1, B*Q*R), lane-dense
    v1 = _interleave_phases(o1, B, Co1, Q, R)                    # (B, 3, 34, 34)

    # deconv2: ConvTranspose2d(3, 4, 3, stride=1) fused with BatchNorm2d(4) (batch stats).
    # NOTE: the deconv2 bias shifts every channel by a constant, which training-mode BN
    # removes exactly, so it is deliberately not applied (saves a DMA + a broadcast-add).
    p2, (B2, OH2, OW2) = _deconv2_patches(v1)
    w2 = _deconv2_weight(params["w2"])
    gb = jnp.stack([params["gamma"], params["beta"]], axis=1)    # (Co2, 2)
    Co2 = params["w2"].shape[1]
    o2 = _pallas_matmul_bn(w2, p2, gb)                           # (Co2, B*OH2*OW2)
    return o2.reshape(Co2, B2, OH2, OW2).transpose(1, 0, 2, 3)   # NCHW output


# --------------------------- reference & driver -------------------------------

def _reference_forward(x, params):
    """Pure-JAX reference (lhs-dilated conv form of ConvTranspose2d) for validation."""
    def deconv(inp, w, b, stride, K):
        w_oihw = jnp.flip(w, axis=(2, 3)).transpose(1, 0, 2, 3)
        y = jax.lax.conv_general_dilated(
            inp, w_oihw, window_strides=(1, 1), padding=[(K - 1, K - 1)] * 2,
            lhs_dilation=(stride, stride),
            dimension_numbers=("NCHW", "OIHW", "NCHW"),
            precision=jax.lax.Precision.HIGHEST)
        return y + b[None, :, None, None]

    v1 = deconv(x, params["w1"], params["b1"], 2, 4)
    v2 = deconv(v1, params["w2"], params["b2"], 1, 3)
    mean = v2.mean(axis=(0, 2, 3), keepdims=True)
    var = jnp.mean((v2 - mean) ** 2, axis=(0, 2, 3), keepdims=True)
    v2n = (v2 - mean) * jax.lax.rsqrt(var + BN_EPS)
    return v2n * params["gamma"][None, :, None, None] + params["beta"][None, :, None, None]


def init_params(key):
    k1, k2, k3, k4 = jax.random.split(key, 4)
    # ConvTranspose2d weight layout: (in_channels, out_channels, kH, kW)
    fan1 = 4 * 4 * 4
    fan2 = 3 * 3 * 3
    bnd1 = 1.0 / (fan1 ** 0.5)
    bnd2 = 1.0 / (fan2 ** 0.5)
    return {
        "w1": jax.random.uniform(k1, (4, 3, 4, 4), jnp.float32, -bnd1, bnd1),
        "b1": jax.random.uniform(k2, (3,), jnp.float32, -bnd1, bnd1),
        "w2": jax.random.uniform(k3, (3, 4, 3, 3), jnp.float32, -bnd2, bnd2),
        "b2": jax.random.uniform(k4, (4,), jnp.float32, -bnd2, bnd2),  # cancels in training-mode BN
        "gamma": jnp.ones((4,), jnp.float32),    # BatchNorm2d default affine init
        "beta": jnp.zeros((4,), jnp.float32),
    }
    # TODO(synk): running_mean/running_var buffer updates of BatchNorm2d are not modeled
    # (not needed for the forward output in training mode).


if __name__ == "__main__":
    key = jax.random.PRNGKey(0)
    kx, kp = jax.random.split(key)
    # Small shapes consistent with the module's (1, 4, 64, 64) input: B=2, C=4, 16x16.
    x = jax.random.normal(kx, (2, 4, 16, 16), jnp.float32)
    params = init_params(kp)

    out = jax.block_until_ready(jax.jit(model_forward)(x, params))
    assert out.shape == (2, 4, 36, 36), out.shape
    assert bool(jnp.all(jnp.isfinite(out)))

    ref = jax.block_until_ready(jax.jit(_reference_forward)(x, params))
    max_err = float(jnp.max(jnp.abs(out - ref)))
    assert bool(jnp.allclose(out, ref, atol=2e-2, rtol=2e-2)), max_err

    print("KERNEL_OK")
</pallas_src>

<mosaic_0001>
module attributes {stable_mosaic.version = 11 : i64} {
  func.func @_deconv1_kernel(%arg0: memref<12x17xf32, #tpu.memory_space<vmem>>, %arg1: memref<17x578xf32, #tpu.memory_space<vmem>>, %arg2: memref<12x578xf32, #tpu.memory_space<vmem>>) attributes {dimension_semantics = [], scalar_prefetch = 0 : i64, scratch_operands = 0 : i64, tpu.core_type = #tpu.core_type<tc>} {
    %c0 = arith.constant 0 : index
    %c0_0 = arith.constant 0 : index
    %0 = vector.load %arg0[%c0, %c0_0] : memref<12x17xf32, #tpu.memory_space<vmem>>, vector<12x17xf32>
    %c0_1 = arith.constant 0 : index
    %c0_2 = arith.constant 0 : index
    %1 = vector.load %arg1[%c0_1, %c0_2] : memref<17x578xf32, #tpu.memory_space<vmem>>, vector<17x578xf32>
    %cst = arith.constant dense<0.000000e+00> : vector<12x578xf32>
    %2 = tpu.matmul %0, %1, %cst {dimension_numbers = #tpu.dot_dimension_numbers<[1], [0], [0], [1], [0, 0, 1, 1], [], []>} : vector<12x17xf32>, vector<17x578xf32>, vector<12x578xf32> -> vector<12x578xf32>
    %c0_3 = arith.constant 0 : index
    %c0_4 = arith.constant 0 : index
    %3 = vector.load %arg2[%c0_3, %c0_4] : memref<12x578xf32, #tpu.memory_space<vmem>>, vector<12x578xf32>
    tpu.vector_store %arg2[%c0_3, %c0_4], %2 {strides = array<i32>} : memref<12x578xf32, #tpu.memory_space<vmem>>, vector<12x578xf32>,
    return
  }
}

module attributes {stable_mosaic.version = 11 : i64} {
  func.func @_deconv2_bn_kernel(%arg0: memref<4x27xf32, #tpu.memory_space<vmem>>, %arg1: memref<27x2592xf32, #tpu.memory_space<vmem>>, %arg2: memref<4x2xf32, #tpu.memory_space<vmem>>, %arg3: memref<4x2592xf32, #tpu.memory_space<vmem>>) attributes {dimension_semantics = [], scalar_prefetch = 0 : i64, scratch_operands = 0 : i64, tpu.core_type = #tpu.core_type<tc>} {
    %c0 = arith.constant 0 : index
    %c0_0 = arith.constant 0 : index
    %0 = vector.load %arg0[%c0, %c0_0] : memref<4x27xf32, #tpu.memory_space<vmem>>, vector<4x27xf32>
    %c0_1 = arith.constant 0 : index
    %c0_2 = arith.constant 0 : index
    %1 = vector.load %arg1[%c0_1, %c0_2] : memref<27x2592xf32, #tpu.memory_space<vmem>>, vector<27x2592xf32>
    %cst = arith.constant dense<0.000000e+00> : vector<4x2592xf32>
    %2 = tpu.matmul %0, %1, %cst {dimension_numbers = #tpu.dot_dimension_numbers<[1], [0], [0], [1], [0, 0, 1, 1], [], []>} : vector<4x27xf32>, vector<27x2592xf32>, vector<4x2592xf32> -> vector<4x2592xf32>
    %cst_3 = arith.constant dense<0.000000e+00> : vector<4xf32>
    %3 = vector.multi_reduction <add>, %2, %cst_3 [1] : vector<4x2592xf32> to vector<4xf32>
    %4 = vector.shape_cast %3 : vector<4xf32> to vector<4x1xf32>
    %cst_4 = arith.constant 2.592000e+03 : f32
    %5 = vector.broadcast %cst_4 : f32 to vector<4x1xf32>
    %6 = arith.divf %4, %5 : vector<4x1xf32>
    %7 = vector.broadcast %6 : vector<4x1xf32> to vector<4x2592xf32>
    %8 = arith.subf %2, %7 : vector<4x2592xf32>
    %9 = arith.mulf %8, %8 : vector<4x2592xf32>
    %cst_5 = arith.constant dense<0.000000e+00> : vector<4xf32>
    %10 = vector.multi_reduction <add>, %9, %cst_5 [1] : vector<4x2592xf32> to vector<4xf32>
    %11 = vector.shape_cast %10 : vector<4xf32> to vector<4x1xf32>
    %cst_6 = arith.constant 2.592000e+03 : f32
    %12 = vector.broadcast %cst_6 : f32 to vector<4x1xf32>
    %13 = arith.divf %11, %12 : vector<4x1xf32>
    %cst_7 = arith.constant 9.99999974E-6 : f32
    %14 = vector.broadcast %cst_7 : f32 to vector<4x1xf32>
    %15 = arith.addf %13, %14 : vector<4x1xf32>
    %16 = math.rsqrt %15 : vector<4x1xf32>
    %c0_8 = arith.constant 0 : index
    %c0_9 = arith.constant 0 : index
    %17 = vector.load %arg2[%c0_8, %c0_9] : memref<4x2xf32, #tpu.memory_space<vmem>>, vector<4x1xf32>
    %18 = arith.mulf %16, %17 : vector<4x1xf32>
    %19 = vector.broadcast %6 : vector<4x1xf32> to vector<4x2592xf32>
    %20 = arith.subf %2, %19 : vector<4x2592xf32>
    %21 = vector.broadcast %18 : vector<4x1xf32> to vector<4x2592xf32>
    %22 = arith.mulf %20, %21 : vector<4x2592xf32>
    %c0_10 = arith.constant 0 : index
    %c1 = arith.constant 1 : index
    %23 = vector.load %arg2[%c0_10, %c1] : memref<4x2xf32, #tpu.memory_space<vmem>>, vector<4x1xf32>
    %24 = vector.broadcast %23 : vector<4x1xf32> to vector<4x2592xf32>
    %25 = arith.addf %22, %24 : vector<4x2592xf32>
    %c0_11 = arith.constant 0 : index
    %c0_12 = arith.constant 0 : index
    %26 = vector.load %arg3[%c0_11, %c0_12] : memref<4x2592xf32, #tpu.memory_space<vmem>>, vector<4x2592xf32>
    tpu.vector_store %arg3[%c0_11, %c0_12], %25 {strides = array<i32>} : memref<4x2592xf32, #tpu.memory_space<vmem>>, vector<4x2592xf32>,
    return
  }
}

</mosaic_0001>

<llo_original>
// kernel: tile.8
$region0: #{tile.8}
  #allocation0 [shape = 's32[1]{0}', space=sflag, size = 0x4, scoped, tag = 'scoped memory for tile.8']
  %s0 = inlined_call_operand.vmem [shape: f32[3], index: 0, kind: input, shape index: {}]
  %s1 = inlined_call_operand.vmem [shape: f32[4,3], index: 1, kind: output, shape index: {}]
  // Predicated region
  $region2: #{tile.8} parent=0 // pred_check
    _
  $region3: #{tile.8} parent=0 // pred_check_branch
    %3 = sbr.rel (0) target = $region5
  $region4: #{tile.8} parent=0 // pred_region
    _
  $region5: #{tile.8} parent=0 // pred_fallthru
    _
  %v4 = vld [vmem:[%s0] ss:$0 sm:$0xff]
  %5 = vst [vmem:[%s1] sm:$0xf] %v4

// kernel: tile.0
$region0: #{tile.0}
  %s0 = inlined_call_operand.vmem [shape: f32[4,3], index: 0, kind: input, shape index: {}]
  %s1 = inlined_call_operand.vmem [shape: f32[12,1], index: 1, kind: output, shape index: {}]
  $region1: #{tile.0} parent=0
    #allocation0 [shape = 'u8[4096]{0}', space=vmem, size = 0x1000, scoped, tag = 'scoped mem for input reshape']
    %s3 = sshllo.u32 0, 4
    %v4 = vld [vmem:[%s0] sm:%s3]
    %5 = vst [vmem:[#allocation0] sm:%s3] %v4
    %v6 = vld [vmem:[#allocation0] sm:$0xf]
    %vm7 = vcmask 7168
    %8 = vst.msk [vmem:[%s1] ss:$3 sm:$0xf] %vm7, %v6
    %v9 = vld [vmem:[#allocation0] sm:$0xf]
    %10 = vrot.lane.b32.xlu0 %v9, 127
    %v11 = vpop.permute.xlu0 %10
    %vm12 = vcmask 7168
    %s13 = scalar_lea.vmem %s1, 1
    %14 = vst.msk [vmem:[%s13] ss:$3 sm:$0xf] %vm12, %v11
    %v15 = vld [vmem:[#allocation0] sm:$0xf]
    %16 = vrot.lane.b32.xlu0 %v15, 126
    %v17 = vpop.permute.xlu0 %16
    %vm18 = vcmask 7168
    %s19 = scalar_lea.vmem %s1, 2
    %20 = vst.msk [vmem:[%s19] ss:$3 sm:$0xf] %vm18, %v17

// kernel: model_forward.2
$region0: #{model_forward.2}
  #allocation0 [shape = 'u32[]', space=smem, size = 0x4, offset = 0x4, fixed_abs, tag = 'smem constant byte address 0x4 - core index']
  #allocation1 [shape = 'u32[144,128]{1,0:T(1,128)}', space=vmem, size = 0x12000, scoped, tag = 'internal scratch']
  %s0 = inlined_call_operand.vmem [shape: f32[12,17], index: 0, kind: input, shape index: {}]
  %s1 = inlined_call_operand.vmem [shape: f32[17,578], index: 1, kind: input, shape index: {}]
  %s2 = inlined_call_operand.vmem [shape: f32[12,578], index: 2, kind: output, shape index: {}]
  %s3 = sld [smem:[#allocation0]]
  $region18: #{model_forward.2} parent=0
    _
  %s5 = ssub.s32 1, %s3
  %s6 = scalar_select 0, %s5, %s3
  // Predicated region
  $region2: #{model_forward.2} parent=0 // pred_check
    _
  $region3: #{model_forward.2} parent=0 // pred_check_branch
    %8 = sbr.rel (0) target = $region5
  $region4: #{model_forward.2} parent=0 // pred_region
    _
  $region5: #{model_forward.2} parent=0 // pred_fallthru
    _
  // Predicated region
  $region6: #{model_forward.2} parent=0 // pred_check
    _
  $region7: #{model_forward.2} parent=0 // pred_check_branch
    %10 = sbr.rel (0) target = $region9
  $region8: #{model_forward.2} parent=0 // pred_region
    _
  $region9: #{model_forward.2} parent=0 // pred_fallthru
    _
  %v11 = vld [vmem:[%s0] sm:$0xff]
  %v12 = vld [vmem:[%s0 + $0x8] sm:$0xf]
  %v13 = vld [vmem:[%s1] sm:$0xff]
  %v14 = vld [vmem:[%s1 + $0x8] sm:$0xff]
  %v15 = vld [vmem:[%s1 + $0x10] sm:$0xff]
  %v16 = vld [vmem:[%s1 + $0x18] sm:$0xff]
  %v17 = vld [vmem:[%s1 + $0x20] sm:$0xff]
  %v18 = vld [vmem:[%s1 + $0x28] sm:$0xff]
  %v19 = vld [vmem:[%s1 + $0x30] sm:$0xff]
  %v20 = vld [vmem:[%s1 + $0x38] sm:$0xff]
  %v21 = vld [vmem:[%s1 + $0x40] sm:$0xff]
  %v22 = vld [vmem:[%s1 + $0x48] sm:$0xff]
  %v23 = vld [vmem:[%s1 + $0x50] sm:$0x1]
  %v24 = vld [vmem:[%s1 + $0x58] sm:$0x1]
  %v25 = vld [vmem:[%s1 + $0x60] sm:$0x1]
  %v26 = vld [vmem:[%s1 + $0x68] sm:$0x1]
  %v27 = vld [vmem:[%s1 + $0x70] sm:$0x1]
  %vm28 = vcmask 138240
  %v30 = vsel %vm28, %v11, 0
  %v33 = vsel %vm28, %v12, 0
  %vm35 = vcmask 1040384
  %v37 = vsel %vm35, %v23, 0
  %v40 = vsel %vm35, %v24, 0
  %v43 = vsel %vm35, %v25, 0
  %v46 = vsel %vm35, %v26, 0
  %v49 = vsel %vm35, %v27, 0
  %51 = vmatprep.subr.mxu0 %v14
  %52 = vmatpush1.msra.mxu0 %v13
  %53 = vmatprep.subr.mxu0 %v19
  %54 = vmatpush1.msra.mxu0 %v18
  %55 = vmatprep.subr.mxu0 %v40
  %56 = vmatpush1.msra.mxu0 %v37
  %57 = vmatprep.subr.mxu0 0.0
  %58 = vmatpush1.msra.mxu0 0.0
  %59 = vmatprep.subr.mxu0 0.0
  %60 = vmatpush1.msra.mxu0 0.0
  %61 = vmatprep.subr.mxu0 0.0
  %62 = vmatpush1.msra.mxu0 0.0
  %63 = vmatprep.subr.mxu0 0.0
  %64 = vmatpush1.msra.mxu0 0.0
  %65 = vmatprep.subr.mxu0 0.0
  %66 = vmatpush1.msra.mxu0 0.0
  %67 = vmatprep.subr.mxu0 0.0
  %68 = vmatpush1.msra.mxu0 0.0
  %69 = vmatprep.subr.mxu0 0.0
  %70 = vmatpush1.msra.mxu0 0.0
  %71 = vmatprep.subr.mxu0 0.0
  %72 = vmatpush1.msra.mxu0 0.0
  %73 = vmatprep.subr.mxu0 0.0
  %74 = vmatpush1.msra.mxu0 0.0
  %75 = vmatprep.subr.mxu0 0.0
  %76 = vmatpush1.msra.mxu0 0.0
  %77 = vmatprep.subr.mxu0 0.0
  %78 = vmatpush1.msra.mxu0 0.0
  %79 = vmatprep.subr.mxu0 0.0
  %80 = vmatpush1.msra.mxu0 0.0
  %81 = vmatprep.subr.mxu0 0.0
  %82 = vmatpush1.msra.mxu0 0.0
  %83 = vmatprep.subr.mxu0 0.0
  %84 = vmatpush1.msra.mxu0 0.0
  %85 = vmatprep.subr.mxu0 0.0
  %86 = vmatpush1.msra.mxu0 0.0
  %87 = vmatprep.subr.mxu0 0.0
  %88 = vmatpush1.msra.mxu0 0.0
  %89 = vmatprep.subr.mxu0 0.0
  %90 = vmatpush1.msra.mxu0 0.0
  %91 = vmatprep.subr.mxu0 0.0
  %92 = vmatpush1.msra.mxu0 0.0
  %93 = vmatprep.subr.mxu0 0.0
  %94 = vmatpush1.msra.mxu0 0.0
  %95 = vmatprep.subr.mxu0 0.0
  %96 = vmatpush1.msra.mxu0 0.0
  %97 = vmatprep.subr.mxu0 0.0
  %98 = vmatpush1.msra.mxu0 0.0
  %99 = vmatprep.subr.mxu0 0.0
  %100 = vmatpush1.msra.mxu0 0.0
  %101 = vmatprep.subr.mxu0 0.0
  %102 = vmatpush1.msra.mxu0 0.0
  %103 = vmatprep.subr.mxu0 0.0
  %104 = vmatpush1.msra.mxu0 0.0
  %105 = vmatprep.subr.mxu0 0.0
  %106 = vmatpush1.msra.mxu0 0.0
  %107 = vmatprep.subr.mxu0 0.0
  %108 = vmatpush1.msra.mxu0 0.0
  %109 = vmatprep.subr.mxu0 0.0
  %110 = vmatpush1.msra.mxu0 0.0
  %111 = vmatprep.subr.mxu0 0.0
  %112 = vmatpush1.msra.mxu0 0.0
  %113 = vmatprep.subr.mxu0 0.0
  %114 = vmatpush1.msra.mxu0 0.0
  %115 = vmatprep.mubr.f32.mxu0 0.0
  %116 = vmatmul.mubr.f32.gmra.mrb[0].mxu0 %v30
  %v117 = vpop.f32.mrb[0].mxu0
  %v118 = vadd.f32 0.0, %v117
  %v119 = vpop.f32.mrb[0].mxu0
  %v120 = vadd.f32 0.0, %v119
  %121 = vmatprep.mubr.f32.mxu0 0.0
  %122 = vmatmul.mubr.f32.gmra.mrb[0].mxu0 %v33
  %v123 = vpop.f32.mrb[0].mxu0
  %v124 = vadd.f32 0.0, %v123
  %v125 = vpop.f32.mrb[0].mxu0
  %v126 = vadd.f32 0.0, %v125
  %127 = vdwg.mxu0
  %128 = vmatprep.subr.mxu0 %v16
  %129 = vmatpush1.msra.mxu0 %v15
  %130 = vmatprep.subr.mxu0 %v21
  %131 = vmatpush1.msra.mxu0 %v20
  %132 = vmatprep.subr.mxu0 %v46
  %133 = vmatpush1.msra.mxu0 %v43
  %134 = vmatprep.subr.mxu0 0.0
  %135 = vmatpush1.msra.mxu0 0.0
  %136 = vmatprep.subr.mxu0 0.0
  %137 = vmatpush1.msra.mxu0 0.0
  %138 = vmatprep.subr.mxu0 0.0
  %139 = vmatpush1.msra.mxu0 0.0
  %140 = vmatprep.subr.mxu0 0.0
  %141 = vmatpush1.msra.mxu0 0.0
  %142 = vmatprep.subr.mxu0 0.0
  %143 = vmatpush1.msra.mxu0 0.0
  %144 = vmatprep.subr.mxu0 0.0
  %145 = vmatpush1.msra.mxu0 0.0
  %146 = vmatprep.subr.mxu0 0.0
  %147 = vmatpush1.msra.mxu0 0.0
  %148 = vmatprep.subr.mxu0 0.0
  %149 = vmatpush1.msra.mxu0 0.0
  %150 = vmatprep.subr.mxu0 0.0
  %151 = vmatpush1.msra.mxu0 0.0
  %152 = vmatprep.subr.mxu0 0.0
  %153 = vmatpush1.msra.mxu0 0.0
  %154 = vmatprep.subr.mxu0 0.0
  %155 = vmatpush1.msra.mxu0 0.0
  %156 = vmatprep.subr.mxu0 0.0
  %157 = vmatpush1.msra.mxu0 0.0
  %158 = vmatprep.subr.mxu0 0.0
  %159 = vmatpush1.msra.mxu0 0.0
  %160 = vmatprep.subr.mxu0 0.0
  %161 = vmatpush1.msra.mxu0 0.0
  %162 = vmatprep.subr.mxu0 0.0
  %163 = vmatpush1.msra.mxu0 0.0
  %164 = vmatprep.subr.mxu0 0.0
  %165 = vmatpush1.msra.mxu0 0.0
  %166 = vmatprep.subr.mxu0 0.0
  %167 = vmatpush1.msra.mxu0 0.0
  %168 = vmatprep.subr.mxu0 0.0
  %169 = vmatpush1.msra.mxu0 0.0
  %170 = vmatprep.subr.mxu0 0.0
  %171 = vmatpush1.msra.mxu0 0.0
  %172 = vmatprep.subr.mxu0 0.0
  %173 = vmatpush1.msra.mxu0 0.0
  %174 = vmatprep.subr.mxu0 0.0
  %175 = vmatpush1.msra.mxu0 0.0
  %176 = vmatprep.subr.mxu0 0.0
  %177 = vmatpush1.msra.mxu0 0.0
  %178 = vmatprep.subr.mxu0 0.0
  %179 = vmatpush1.msra.mxu0 0.0
  %180 = vmatprep.subr.mxu0 0.0
  %181 = vmatpush1.msra.mxu0 0.0
  %182 = vmatprep.subr.mxu0 0.0
  %183 = vmatpush1.msra.mxu0 0.0
  %184 = vmatprep.subr.mxu0 0.0
  %185 = vmatpush1.msra.mxu0 0.0
  %186 = vmatprep.subr.mxu0 0.0
  %187 = vmatpush1.msra.mxu0 0.0
  %188 = vmatprep.subr.mxu0 0.0
  %189 = vmatpush1.msra.mxu0 0.0
  %190 = vmatprep.subr.mxu0 0.0
  %191 = vmatpush1.msra.mxu0 0.0
  %192 = vmatprep.mubr.f32.mxu0 0.0
  %193 = vmatmul.mubr.f32.gmra.mrb[0].mxu0 %v30
  %v194 = vpop.f32.mrb[0].mxu0
  %v195 = vadd.f32 0.0, %v194
  %v196 = vpop.f32.mrb[0].mxu0
  %v197 = vadd.f32 0.0, %v196
  %198 = vmatprep.mubr.f32.mxu0 0.0
  %199 = vmatmul.mubr.f32.gmra.mrb[0].mxu0 %v33
  %v200 = vpop.f32.mrb[0].mxu0
  %v201 = vadd.f32 0.0, %v200
  %v202 = vpop.f32.mrb[0].mxu0
  %v203 = vadd.f32 0.0, %v202
  %204 = vdwg.mxu0
  %205 = vmatprep.subr.mxu0 0.0
  %206 = vmatpush1.msra.mxu0 %v17
  %207 = vmatprep.subr.mxu0 0.0
  %208 = vmatpush1.msra.mxu0 %v22
  %209 = vmatprep.subr.mxu0 0.0
  %210 = vmatpush1.msra.mxu0 %v49
  %211 = vmatprep.subr.mxu0 0.0
  %212 = vmatpush1.msra.mxu0 0.0
  %213 = vmatprep.subr.mxu0 0.0
  %214 = vmatpush1.msra.mxu0 0.0
  %215 = vmatprep.subr.mxu0 0.0
  %216 = vmatpush1.msra.mxu0 0.0
  %217 = vmatprep.subr.mxu0 0.0
  %218 = vmatpush1.msra.mxu0 0.0
  %219 = vmatprep.subr.mxu0 0.0
  %220 = vmatpush1.msra.mxu0 0.0
  %221 = vmatprep.subr.mxu0 0.0
  %222 = vmatpush1.msra.mxu0 0.0
  %223 = vmatprep.subr.mxu0 0.0
  %224 = vmatpush1.msra.mxu0 0.0
  %225 = vmatprep.subr.mxu0 0.0
  %226 = vmatpush1.msra.mxu0 0.0
  %227 = vmatprep.subr.mxu0 0.0
  %228 = vmatpush1.msra.mxu0 0.0
  %229 = vmatprep.subr.mxu0 0.0
  %230 = vmatpush1.msra.mxu0 0.0
  %231 = vmatprep.subr.mxu0 0.0
  %232 = vmatpush1.msra.mxu0 0.0
  %233 = vmatprep.subr.mxu0 0.0
  %234 = vmatpush1.msra.mxu0 0.0
  %235 = vmatprep.subr.mxu0 0.0
  %236 = vmatpush1.msra.mxu0 0.0
  %237 = vmatprep.subr.mxu0 0.0
  %238 = vmatpush1.msra.mxu0 0.0
  %239 = vmatprep.subr.mxu0 0.0
  %240 = vmatpush1.msra.mxu0 0.0
  %241 = vmatprep.subr.mxu0 0.0
  %242 = vmatpush1.msra.mxu0 0.0
  %243 = vmatprep.subr.mxu0 0.0
  %244 = vmatpush1.msra.mxu0 0.0
  %245 = vmatprep.subr.mxu0 0.0
  %246 = vmatpush1.msra.mxu0 0.0
  %247 = vmatprep.subr.mxu0 0.0
  %248 = vmatpush1.msra.mxu0 0.0
  %249 = vmatprep.subr.mxu0 0.0
  %250 = vmatpush1.msra.mxu0 0.0
  %251 = vmatprep.subr.mxu0 0.0
  %252 = vmatpush1.msra.mxu0 0.0
  %253 = vmatprep.subr.mxu0 0.0
  %254 = vmatpush1.msra.mxu0 0.0
  %255 = vmatprep.subr.mxu0 0.0
  %256 = vmatpush1.msra.mxu0 0.0
  %257 = vmatprep.subr.mxu0 0.0
  %258 = vmatpush1.msra.mxu0 0.0
  %259 = vmatprep.subr.mxu0 0.0
  %260 = vmatpush1.msra.mxu0 0.0
  %261 = vmatprep.subr.mxu0 0.0
  %262 = vmatpush1.msra.mxu0 0.0
  %263 = vmatprep.subr.mxu0 0.0
  %264 = vmatpush1.msra.mxu0 0.0
  %265 = vmatprep.subr.mxu0 0.0
  %266 = vmatpush1.msra.mxu0 0.0
  %267 = vmatprep.subr.mxu0 0.0
  %268 = vmatpush1.msra.mxu0 0.0
  %269 = vmatprep.mubr.f32.mxu0 0.0
  %270 = vmatmul.mubr.f32.gmra.mrb[0].mxu0 %v30
  %v271 = vpop.f32.mrb[0].mxu0
  %v272 = vadd.f32 0.0, %v271
  %v273 = vpop.f32.mrb[0].mxu0
  %274 = vmatprep.mubr.f32.mxu0 0.0
  %275 = vmatmul.mubr.f32.gmra.mrb[0].mxu0 %v33
  %v276 = vpop.f32.mrb[0].mxu0
  %v277 = vadd.f32 0.0, %v276
  %v278 = vpop.f32.mrb[0].mxu0
  %279 = vdwg.mxu0
  %280 = vst [vmem:[%s2] sm:$0xff] %v118
  %281 = vst [vmem:[%s2 + $0x8] sm:$0xff] %v120
  %282 = vst [vmem:[%s2 + $0x10] sm:$0xff] %v195
  %283 = vst [vmem:[%s2 + $0x18] sm:$0xff] %v197
  %vm284 = vcmask 539648
  %285 = vst.msk [vmem:[%s2 + $0x20] sm:$0xff] %vm284, %v272
  %286 = vst [vmem:[%s2 + $0x28] sm:$0xf] %v124
  %287 = vst [vmem:[%s2 + $0x30] sm:$0xf] %v126
  %288 = vst [vmem:[%s2 + $0x38] sm:$0xf] %v201
  %289 = vst [vmem:[%s2 + $0x40] sm:$0xf] %v203
  %vm290 = vcmask 535552
  %291 = vst.msk [vmem:[%s2 + $0x48] sm:$0xf] %vm290, %v277
  // Predicated region
  $region10: #{model_forward.2} parent=0 // pred_check
    _
  $region11: #{model_forward.2} parent=0 // pred_check_branch
    %293 = sbr.rel (0) target = $region13
  $region12: #{model_forward.2} parent=0 // pred_region
    _
  $region13: #{model_forward.2} parent=0 // pred_fallthru
    _
  // Predicated region
  $region14: #{model_forward.2} parent=0 // pred_check
    _
  $region15: #{model_forward.2} parent=0 // pred_check_branch
    %295 = sbr.rel (0) target = $region17
  $region16: #{model_forward.2} parent=0 // pred_region
    _
  $region17: #{model_forward.2} parent=0 // pred_fallthru
    _

// kernel: model_forward.3
$region0: #{model_forward.3}
  #allocation0 [shape = 'u32[]', space=smem, size = 0x4, offset = 0x4, fixed_abs, tag = 'smem constant byte address 0x4 - core index']
  #allocation1 [shape = 'u32[144,128]{1,0:T(1,128)}', space=vmem, size = 0x12000, scoped, tag = 'internal scratch']
  %s0 = inlined_call_operand.vmem [shape: f32[4,27], index: 0, kind: input, shape index: {}]
  %s1 = inlined_call_operand.vmem [shape: f32[27,2592], index: 1, kind: input, shape index: {}]
  %s2 = inlined_call_operand.vmem [shape: f32[4,2], index: 2, kind: input, shape index: {}]
  %s3 = inlined_call_operand.vmem [shape: f32[4,2592], index: 3, kind: output, shape index: {}]
  %s4 = sld [smem:[#allocation0]]
  $region22: #{model_forward.3} parent=0
    _
  %s6 = ssub.s32 1, %s4
  %s7 = scalar_select 0, %s6, %s4
  // Predicated region
  $region2: #{model_forward.3} parent=0 // pred_check
    _
  $region3: #{model_forward.3} parent=0 // pred_check_branch
    %9 = sbr.rel (0) target = $region5
  $region4: #{model_forward.3} parent=0 // pred_region
    _
  $region5: #{model_forward.3} parent=0 // pred_fallthru
    _
  // Predicated region
  $region6: #{model_forward.3} parent=0 // pred_check
    _
  $region7: #{model_forward.3} parent=0 // pred_check_branch
    %11 = sbr.rel (0) target = $region9
  $region8: #{model_forward.3} parent=0 // pred_region
    _
  $region9: #{model_forward.3} parent=0 // pred_fallthru
    _
  // Predicated region
  $region10: #{model_forward.3} parent=0 // pred_check
    _
  $region11: #{model_forward.3} parent=0 // pred_check_branch
    %13 = sbr.rel (0) target = $region13
  $region12: #{model_forward.3} parent=0 // pred_region
    _
  $region13: #{model_forward.3} parent=0 // pred_fallthru
    _
  %v14 = vld [vmem:[%s0] sm:$0xf]
  %v15 = vld [vmem:[%s1] sm:$0xff]
  %v16 = vld [vmem:[%s1 + $0x8] sm:$0xff]
  %v17 = vld [vmem:[%s1 + $0x10] sm:$0xff]
  %v18 = vld [vmem:[%s1 + $0x18] sm:$0xff]
  %v19 = vld [vmem:[%s1 + $0x20] sm:$0xff]
  %v20 = vld [vmem:[%s1 + $0x28] sm:$0xff]
  %v21 = vld [vmem:[%s1 + $0x30] sm:$0xff]
  %v22 = vld [vmem:[%s1 + $0x38] sm:$0xff]
  %v23 = vld [vmem:[%s1 + $0x40] sm:$0xff]
  %v24 = vld [vmem:[%s1 + $0x48] sm:$0xff]
  %v25 = vld [vmem:[%s1 + $0x50] sm:$0xff]
  %v26 = vld [vmem:[%s1 + $0x58] sm:$0xff]
  %v27 = vld [vmem:[%s1 + $0x60] sm:$0xff]
  %v28 = vld [vmem:[%s1 + $0x68] sm:$0xff]
  %v29 = vld [vmem:[%s1 + $0x70] sm:$0xff]
  %v30 = vld [vmem:[%s1 + $0x78] sm:$0xff]
  %v31 = vld [vmem:[%s1 + $0x80] sm:$0xff]
  %v32 = vld [vmem:[%s1 + $0x88] sm:$0xff]
  %v33 = vld [vmem:[%s1 + $0x90] sm:$0xff]
  %v34 = vld [vmem:[%s1 + $0x98] sm:$0xff]
  %v35 = vld [vmem:[%s1 + $0xa0] sm:$0xff]
  %v36 = vld [vmem:[%s1 + $0xa8] sm:$0xff]
  %v37 = vld [vmem:[%s1 + $0xb0] sm:$0xff]
  %v38 = vld [vmem:[%s1 + $0xb8] sm:$0xff]
  %v39 = vld [vmem:[%s1 + $0xc0] sm:$0xff]
  %v40 = vld [vmem:[%s1 + $0xc8] sm:$0xff]
  %v41 = vld [vmem:[%s1 + $0xd0] sm:$0xff]
  %v42 = vld [vmem:[%s1 + $0xd8] sm:$0xff]
  %v43 = vld [vmem:[%s1 + $0xe0] sm:$0xff]
  %v44 = vld [vmem:[%s1 + $0xe8] sm:$0xff]
  %v45 = vld [vmem:[%s1 + $0xf0] sm:$0xff]
  %v46 = vld [vmem:[%s1 + $0xf8] sm:$0xff]
  %v47 = vld [vmem:[%s1 + $0x100] sm:$0xff]
  %v48 = vld [vmem:[%s1 + $0x108] sm:$0xff]
  %v49 = vld [vmem:[%s1 + $0x110] sm:$0xff]
  %v50 = vld [vmem:[%s1 + $0x118] sm:$0xff]
  %v51 = vld [vmem:[%s1 + $0x120] sm:$0xff]
  %v52 = vld [vmem:[%s1 + $0x128] sm:$0xff]
  %v53 = vld [vmem:[%s1 + $0x130] sm:$0xff]
  %v54 = vld [vmem:[%s1 + $0x138] sm:$0xff]
  %v55 = vld [vmem:[%s1 + $0x140] sm:$0xff]
  %v56 = vld [vmem:[%s1 + $0x148] sm:$0xff]
  %v57 = vld [vmem:[%s1 + $0x150] sm:$0xff]
  %v58 = vld [vmem:[%s1 + $0x158] sm:$0xff]
  %v59 = vld [vmem:[%s1 + $0x160] sm:$0xff]
  %v60 = vld [vmem:[%s1 + $0x168] sm:$0xff]
  %v61 = vld [vmem:[%s1 + $0x170] sm:$0xff]
  %v62 = vld [vmem:[%s1 + $0x178] sm:$0xff]
  %v63 = vld [vmem:[%s1 + $0x180] sm:$0xff]
  %v64 = vld [vmem:[%s1 + $0x188] sm:$0xff]
  %v65 = vld [vmem:[%s1 + $0x190] sm:$0xff]
  %v66 = vld [vmem:[%s1 + $0x198] sm:$0xff]
  %v67 = vld [vmem:[%s1 + $0x1a0] sm:$0xff]
  %v68 = vld [vmem:[%s1 + $0x1a8] sm:$0xff]
  %v69 = vld [vmem:[%s1 + $0x1b0] sm:$0xff]
  %v70 = vld [vmem:[%s1 + $0x1b8] sm:$0xff]
  %v71 = vld [vmem:[%s1 + $0x1c0] sm:$0xff]
  %v72 = vld [vmem:[%s1 + $0x1c8] sm:$0xff]
  %v73 = vld [vmem:[%s1 + $0x1d0] sm:$0xff]
  %v74 = vld [vmem:[%s1 + $0x1d8] sm:$0xff]
  %v75 = vld [vmem:[%s1 + $0x1e0] sm:$0xff]
  %v76 = vld [vmem:[%s1 + $0x1e8] sm:$0xff]
  %v77 = vld [vmem:[%s1 + $0x1f0] sm:$0xff]
  %v78 = vld [vmem:[%s1 + $0x1f8] sm:$0x7]
  %v79 = vld [vmem:[%s1 + $0x200] sm:$0x7]
  %v80 = vld [vmem:[%s1 + $0x208] sm:$0x7]
  %v81 = vld [vmem:[%s1 + $0x210] sm:$0x7]
  %v82 = vld [vmem:[%s1 + $0x218] sm:$0x7]
  %v83 = vld [vmem:[%s1 + $0x220] sm:$0x7]
  %v84 = vld [vmem:[%s1 + $0x228] sm:$0x7]
  %v85 = vld [vmem:[%s1 + $0x230] sm:$0x7]
  %v86 = vld [vmem:[%s1 + $0x238] sm:$0x7]
  %v87 = vld [vmem:[%s1 + $0x240] sm:$0x7]
  %v88 = vld [vmem:[%s1 + $0x248] sm:$0x7]
  %v89 = vld [vmem:[%s1 + $0x250] sm:$0x7]
  %v90 = vld [vmem:[%s1 + $0x258] sm:$0x7]
  %v91 = vld [vmem:[%s1 + $0x260] sm:$0x7]
  %v92 = vld [vmem:[%s1 + $0x268] sm:$0x7]
  %v93 = vld [vmem:[%s1 + $0x270] sm:$0x7]
  %v94 = vld [vmem:[%s1 + $0x278] sm:$0x7]
  %v95 = vld [vmem:[%s1 + $0x280] sm:$0x7]
  %v96 = vld [vmem:[%s1 + $0x288] sm:$0x7]
  %v97 = vld [vmem:[%s1 + $0x290] sm:$0x7]
  %v98 = vld [vmem:[%s1 + $0x298] sm:$0x7]
  %vm99 = vcmask 220160
  %v101 = vsel %vm99, %v14, 0
  %vm103 = vcmask 1042432
  %v105 = vsel %vm103, %v78, 0
  %v108 = vsel %vm103, %v79, 0
  %v111 = vsel %vm103, %v80, 0
  %v114 = vsel %vm103, %v81, 0
  %v117 = vsel %vm103, %v82, 0
  %v120 = vsel %vm103, %v83, 0
  %v123 = vsel %vm103, %v84, 0
  %v126 = vsel %vm103, %v85, 0
  %v129 = vsel %vm103, %v86, 0
  %v132 = vsel %vm103, %v87, 0
  %v135 = vsel %vm103, %v88, 0
  %v138 = vsel %vm103, %v89, 0
  %v141 = vsel %vm103, %v90, 0
  %v144 = vsel %vm103, %v91, 0
  %v147 = vsel %vm103, %v92, 0
  %v150 = vsel %vm103, %v93, 0
  %v153 = vsel %vm103, %v94, 0
  %v156 = vsel %vm103, %v95, 0
  %v159 = vsel %vm103, %v96, 0
  %v162 = vsel %vm103, %v97, 0
  %v165 = vsel %vm103, %v98, 0
  %167 = vmatprep.subr.mxu0 %v16
  %168 = vmatpush1.msra.mxu0 %v15
  %169 = vmatprep.subr.mxu0 %v37
  %170 = vmatpush1.msra.mxu0 %v36
  %171 = vmatprep.subr.mxu0 %v58
  %172 = vmatpush1.msra.mxu0 %v57
  %173 = vmatprep.subr.mxu0 %v108
  %174 = vmatpush1.msra.mxu0 %v105
  %175 = vmatprep.subr.mxu0 0.0
  %176 = vmatpush1.msra.mxu0 0.0
  %177 = vmatprep.subr.mxu0 0.0
  %178 = vmatpush1.msra.mxu0 0.0
  %179 = vmatprep.subr.mxu0 0.0
  %180 = vmatpush1.msra.mxu0 0.0
  %181 = vmatprep.subr.mxu0 0.0
  %182 = vmatpush1.msra.mxu0 0.0
  %183 = vmatprep.subr.mxu0 0.0
  %184 = vmatpush1.msra.mxu0 0.0
  %185 = vmatprep.subr.mxu0 0.0
  %186 = vmatpush1.msra.mxu0 0.0
  %187 = vmatprep.subr.mxu0 0.0
  %188 = vmatpush1.msra.mxu0 0.0
  %189 = vmatprep.subr.mxu0 0.0
  %190 = vmatpush1.msra.mxu0 0.0
  %191 = vmatprep.subr.mxu0 0.0
  %192 = vmatpush1.msra.mxu0 0.0
  %193 = vmatprep.subr.mxu0 0.0
  %194 = vmatpush1.msra.mxu0 0.0
  %195 = vmatprep.subr.mxu0 0.0
  %196 = vmatpush1.msra.mxu0 0.0
  %197 = vmatprep.subr.mxu0 0.0
  %198 = vmatpush1.msra.mxu0 0.0
  %199 = vmatprep.subr.mxu0 0.0
  %200 = vmatpush1.msra.mxu0 0.0
  %201 = vmatprep.subr.mxu0 0.0
  %202 = vmatpush1.msra.mxu0 0.0
  %203 = vmatprep.subr.mxu0 0.0
  %204 = vmatpush1.msra.mxu0 0.0
  %205 = vmatprep.subr.mxu0 0.0
  %206 = vmatpush1.msra.mxu0 0.0
  %207 = vmatprep.subr.mxu0 0.0
  %208 = vmatpush1.msra.mxu0 0.0
  %209 = vmatprep.subr.mxu0 0.0
  %210 = vmatpush1.msra.mxu0 0.0
  %211 = vmatprep.subr.mxu0 0.0
  %212 = vmatpush1.msra.mxu0 0.0
  %213 = vmatprep.subr.mxu0 0.0
  %214 = vmatpush1.msra.mxu0 0.0
  %215 = vmatprep.subr.mxu0 0.0
  %216 = vmatpush1.msra.mxu0 0.0
  %217 = vmatprep.subr.mxu0 0.0
  %218 = vmatpush1.msra.mxu0 0.0
  %219 = vmatprep.subr.mxu0 0.0
  %220 = vmatpush1.msra.mxu0 0.0
  %221 = vmatprep.subr.mxu0 0.0
  %222 = vmatpush1.msra.mxu0 0.0
  %223 = vmatprep.subr.mxu0 0.0
  %224 = vmatpush1.msra.mxu0 0.0
  %225 = vmatprep.subr.mxu0 0.0
  %226 = vmatpush1.msra.mxu0 0.0
  %227 = vmatprep.subr.mxu0 0.0
  %228 = vmatpush1.msra.mxu0 0.0
  %229 = vmatprep.subr.mxu0 0.0
  %230 = vmatpush1.msra.mxu0 0.0
  %231 = vmatprep.mubr.f32.mxu0 0.0
  %232 = vmatmul.mubr.f32.gmra.mrb[0].mxu0 %v101
  %v233 = vpop.f32.mrb[0].mxu0
  %v234 = vadd.f32 0.0, %v233
  %v235 = vpop.f32.mrb[0].mxu0
  %v236 = vadd.f32 0.0, %v235
  %237 = vdwg.mxu0
  %238 = vmatprep.subr.mxu0 %v18
  %239 = vmatpush1.msra.mxu0 %v17
  %240 = vmatprep.subr.mxu0 %v39
  %241 = vmatpush1.msra.mxu0 %v38
  %242 = vmatprep.subr.mxu0 %v60
  %243 = vmatpush1.msra.mxu0 %v59
  %244 = vmatprep.subr.mxu0 %v114
  %245 = vmatpush1.msra.mxu0 %v111
  %246 = vmatprep.subr.mxu0 0.0
  %247 = vmatpush1.msra.mxu0 0.0
  %248 = vmatprep.subr.mxu0 0.0
  %249 = vmatpush1.msra.mxu0 0.0
  %250 = vmatprep.subr.mxu0 0.0
  %251 = vmatpush1.msra.mxu0 0.0
  %252 = vmatprep.subr.mxu0 0.0
  %253 = vmatpush1.msra.mxu0 0.0
  %254 = vmatprep.subr.mxu0 0.0
  %255 = vmatpush1.msra.mxu0 0.0
  %256 = vmatprep.subr.mxu0 0.0
  %257 = vmatpush1.msra.mxu0 0.0
  %258 = vmatprep.subr.mxu0 0.0
  %259 = vmatpush1.msra.mxu0 0.0
  %260 = vmatprep.subr.mxu0 0.0
  %261 = vmatpush1.msra.mxu0 0.0
  %262 = vmatprep.subr.mxu0 0.0
  %263 = vmatpush1.msra.mxu0 0.0
  %264 = vmatprep.subr.mxu0 0.0
  %265 = vmatpush1.msra.mxu0 0.0
  %266 = vmatprep.subr.mxu0 0.0
  %267 = vmatpush1.msra.mxu0 0.0
  %268 = vmatprep.subr.mxu0 0.0
  %269 = vmatpush1.msra.mxu0 0.0
  %270 = vmatprep.subr.mxu0 0.0
  %271 = vmatpush1.msra.mxu0 0.0
  %272 = vmatprep.subr.mxu0 0.0
  %273 = vmatpush1.msra.mxu0 0.0
  %274 = vmatprep.subr.mxu0 0.0
  %275 = vmatpush1.msra.mxu0 0.0
  %276 = vmatprep.subr.mxu0 0.0
  %277 = vmatpush1.msra.mxu0 0.0
  %278 = vmatprep.subr.mxu0 0.0
  %279 = vmatpush1.msra.mxu0 0.0
  %280 = vmatprep.subr.mxu0 0.0
  %281 = vmatpush1.msra.mxu0 0.0
  %282 = vmatprep.subr.mxu0 0.0
  %283 = vmatpush1.msra.mxu0 0.0
  %284 = vmatprep.subr.mxu0 0.0
  %285 = vmatpush1.msra.mxu0 0.0
  %286 = vmatprep.subr.mxu0 0.0
  %287 = vmatpush1.msra.mxu0 0.0
  %288 = vmatprep.subr.mxu0 0.0
  %289 = vmatpush1.msra.mxu0 0.0
  %290 = vmatprep.subr.mxu0 0.0
  %291 = vmatpush1.msra.mxu0 0.0
  %292 = vmatprep.subr.mxu0 0.0
  %293 = vmatpush1.msra.mxu0 0.0
  %294 = vmatprep.subr.mxu0 0.0
  %295 = vmatpush1.msra.mxu0 0.0
  %296 = vmatprep.subr.mxu0 0.0
  %297 = vmatpush1.msra.mxu0 0.0
  %298 = vmatprep.subr.mxu0 0.0
  %299 = vmatpush1.msra.mxu0 0.0
  %300 = vmatprep.subr.mxu0 0.0
  %301 = vmatpush1.msra.mxu0 0.0
  %302 = vmatprep.mubr.f32.mxu0 0.0
  %303 = vmatmul.mubr.f32.gmra.mrb[0].mxu0 %v101
  %v304 = vpop.f32.mrb[0].mxu0
  %v305 = vadd.f32 0.0, %v304
  %v306 = vpop.f32.mrb[0].mxu0
  %v307 = vadd.f32 0.0, %v306
  %308 = vdwg.mxu0
  %309 = vmatprep.subr.mxu0 %v20
  %310 = vmatpush1.msra.mxu0 %v19
  %311 = vmatprep.subr.mxu0 %v41
  %312 = vmatpush1.msra.mxu0 %v40
  %313 = vmatprep.subr.mxu0 %v62
  %314 = vmatpush1.msra.mxu0 %v61
  %315 = vmatprep.subr.mxu0 %v120
  %316 = vmatpush1.msra.mxu0 %v117
  %317 = vmatprep.subr.mxu0 0.0
  %318 = vmatpush1.msra.mxu0 0.0
  %319 = vmatprep.subr.mxu0 0.0
  %320 = vmatpush1.msra.mxu0 0.0
  %321 = vmatprep.subr.mxu0 0.0
  %322 = vmatpush1.msra.mxu0 0.0
  %323 = vmatprep.subr.mxu0 0.0
  %324 = vmatpush1.msra.mxu0 0.0
  %325 = vmatprep.subr.mxu0 0.0
  %326 = vmatpush1.msra.mxu0 0.0
  %327 = vmatprep.subr.mxu0 0.0
  %328 = vmatpush1.msra.mxu0 0.0
  %329 = vmatprep.subr.mxu0 0.0
  %330 = vmatpush1.msra.mxu0 0.0
  %331 = vmatprep.subr.mxu0 0.0
  %332 = vmatpush1.msra.mxu0 0.0
  %333 = vmatprep.subr.mxu0 0.0
  %334 = vmatpush1.msra.mxu0 0.0
  %335 = vmatprep.subr.mxu0 0.0
  %336 = vmatpush1.msra.mxu0 0.0
  %337 = vmatprep.subr.mxu0 0.0
  %338 = vmatpush1.msra.mxu0 0.0
  %339 = vmatprep.subr.mxu0 0.0
  %340 = vmatpush1.msra.mxu0 0.0
  %341 = vmatprep.subr.mxu0 0.0
  %342 = vmatpush1.msra.mxu0 0.0
  %343 = vmatprep.subr.mxu0 0.0
  %344 = vmatpush1.msra.mxu0 0.0
  %345 = vmatprep.subr.mxu0 0.0
  %346 = vmatpush1.msra.mxu0 0.0
  %347 = vmatprep.subr.mxu0 0.0
  %348 = vmatpush1.msra.mxu0 0.0
  %349 = vmatprep.subr.mxu0 0.0
  %350 = vmatpush1.msra.mxu0 0.0
  %351 = vmatprep.subr.mxu0 0.0
  %352 = vmatpush1.msra.mxu0 0.0
  %353 = vmatprep.subr.mxu0 0.0
  %354 = vmatpush1.msra.mxu0 0.0
  %355 = vmatprep.subr.mxu0 0.0
  %356 = vmatpush1.msra.mxu0 0.0
  %357 = vmatprep.subr.mxu0 0.0
  %358 = vmatpush1.msra.mxu0 0.0
  %359 = vmatprep.subr.mxu0 0.0
  %360 = vmatpush1.msra.mxu0 0.0
  %361 = vmatprep.subr.mxu0 0.0
  %362 = vmatpush1.msra.mxu0 0.0
  %363 = vmatprep.subr.mxu0 0.0
  %364 = vmatpush1.msra.mxu0 0.0
  %365 = vmatprep.subr.mxu0 0.0
  %366 = vmatpush1.msra.mxu0 0.0
  %367 = vmatprep.subr.mxu0 0.0
  %368 = vmatpush1.msra.mxu0 0.0
  %369 = vmatprep.subr.mxu0 0.0
  %370 = vmatpush1.msra.mxu0 0.0
  %371 = vmatprep.subr.mxu0 0.0
  %372 = vmatpush1.msra.mxu0 0.0
  %373 = vmatprep.mubr.f32.mxu0 0.0
  %374 = vmatmul.mubr.f32.gmra.mrb[0].mxu0 %v101
  %v375 = vpop.f32.mrb[0].mxu0
  %v376 = vadd.f32 0.0, %v375
  %v377 = vpop.f32.mrb[0].mxu0
  %v378 = vadd.f32 0.0, %v377
  %379 = vdwg.mxu0
  %380 = vmatprep.subr.mxu0 %v22
  %381 = vmatpush1.msra.mxu0 %v21
  %382 = vmatprep.subr.mxu0 %v43
  %383 = vmatpush1.msra.mxu0 %v42
  %384 = vmatprep.subr.mxu0 %v64
  %385 = vmatpush1.msra.mxu0 %v63
  %386 = vmatprep.subr.mxu0 %v126
  %387 = vmatpush1.msra.mxu0 %v123
  %388 = vmatprep.subr.mxu0 0.0
  %389 = vmatpush1.msra.mxu0 0.0
  %390 = vmatprep.subr.mxu0 0.0
  %391 = vmatpush1.msra.mxu0 0.0
  %392 = vmatprep.subr.mxu0 0.0
  %393 = vmatpush1.msra.mxu0 0.0
  %394 = vmatprep.subr.mxu0 0.0
  %395 = vmatpush1.msra.mxu0 0.0
  %396 = vmatprep.subr.mxu0 0.0
  %397 = vmatpush1.msra.mxu0 0.0
  %398 = vmatprep.subr.mxu0 0.0
  %399 = vmatpush1.msra.mxu0 0.0
  %400 = vmatprep.subr.mxu0 0.0
  %401 = vmatpush1.msra.mxu0 0.0
  %402 = vmatprep.subr.mxu0 0.0
  %403 = vmatpush1.msra.mxu0 0.0
  %404 = vmatprep.subr.mxu0 0.0
  %405 = vmatpush1.msra.mxu0 0.0
  %406 = vmatprep.subr.mxu0 0.0
  %407 = vmatpush1.msra.mxu0 0.0
  %408 = vmatprep.subr.mxu0 0.0
  %409 = vmatpush1.msra.mxu0 0.0
  %410 = vmatprep.subr.mxu0 0.0
  %411 = vmatpush1.msra.mxu0 0.0
  %412 = vmatprep.subr.mxu0 0.0
  %413 = vmatpush1.msra.mxu0 0.0
  %414 = vmatprep.subr.mxu0 0.0
  %415 = vmatpush1.msra.mxu0 0.0
  %416 = vmatprep.subr.mxu0 0.0
  %417 = vmatpush1.msra.mxu0 0.0
  %418 = vmatprep.subr.mxu0 0.0
  %419 = vmatpush1.msra.mxu0 0.0
  %420 = vmatprep.subr.mxu0 0.0
  %421 = vmatpush1.msra.mxu0 0.0
  %422 = vmatprep.subr.mxu0 0.0
  %423 = vmatpush1.msra.mxu0 0.0
  %424 = vmatprep.subr.mxu0 0.0
  %425 = vmatpush1.msra.mxu0 0.0
  %426 = vmatprep.subr.mxu0 0.0
  %427 = vmatpush1.msra.mxu0 0.0
  %428 = vmatprep.subr.mxu0 0.0
  %429 = vmatpush1.msra.mxu0 0.0
  %430 = vmatprep.subr.mxu0 0.0
  %431 = vmatpush1.msra.mxu0 0.0
  %432 = vmatprep.subr.mxu0 0.0
  %433 = vmatpush1.msra.mxu0 0.0
  %434 = vmatprep.subr.mxu0 0.0
  %435 = vmatpush1.msra.mxu0 0.0
  %436 = vmatprep.subr.mxu0 0.0
  %437 = vmatpush1.msra.mxu0 0.0
  %438 = vmatprep.subr.mxu0 0.0
  %439 = vmatpush1.msra.mxu0 0.0
  %440 = vmatprep.subr.mxu0 0.0
  %441 = vmatpush1.msra.mxu0 0.0
  %442 = vmatprep.subr.mxu0 0.0
  %443 = vmatpush1.msra.mxu0 0.0
  %444 = vmatprep.mubr.f32.mxu0 0.0
  %445 = vmatmul.mubr.f32.gmra.mrb[0].mxu0 %v101
  %v446 = vpop.f32.mrb[0].mxu0
  %v447 = vadd.f32 0.0, %v446
  %v448 = vpop.f32.mrb[0].mxu0
  %v449 = vadd.f32 0.0, %v448
  %450 = vdwg.mxu0
  %451 = vmatprep.subr.mxu0 %v24
  %452 = vmatpush1.msra.mxu0 %v23
  %453 = vmatprep.subr.mxu0 %v45
  %454 = vmatpush1.msra.mxu0 %v44
  %455 = vmatprep.subr.mxu0 %v66
  %456 = vmatpush1.msra.mxu0 %v65
  %457 = vmatprep.subr.mxu0 %v132
  %458 = vmatpush1.msra.mxu0 %v129
  %459 = vmatprep.subr.mxu0 0.0
  %460 = vmatpush1.msra.mxu0 0.0
  %461 = vmatprep.subr.mxu0 0.0
  %462 = vmatpush1.msra.mxu0 0.0
  %463 = vmatprep.subr.mxu0 0.0
  %464 = vmatpush1.msra.mxu0 0.0
  %465 = vmatprep.subr.mxu0 0.0
  %466 = vmatpush1.msra.mxu0 0.0
  %467 = vmatprep.subr.mxu0 0.0
  %468 = vmatpush1.msra.mxu0 0.0
  %469 = vmatprep.subr.mxu0 0.0
  %470 = vmatpush1.msra.mxu0 0.0
  %471 = vmatprep.subr.mxu0 0.0
  %472 = vmatpush1.msra.mxu0 0.0
  %473 = vmatprep.subr.mxu0 0.0
  %474 = vmatpush1.msra.mxu0 0.0
  %475 = vmatprep.subr.mxu0 0.0
  %476 = vmatpush1.msra.mxu0 0.0
  %477 = vmatprep.subr.mxu0 0.0
  %478 = vmatpush1.msra.mxu0 0.0
  %479 = vmatprep.subr.mxu0 0.0
  %480 = vmatpush1.msra.mxu0 0.0
  %481 = vmatprep.subr.mxu0 0.0
  %482 = vmatpush1.msra.mxu0 0.0
  %483 = vmatprep.subr.mxu0 0.0
  %484 = vmatpush1.msra.mxu0 0.0
  %485 = vmatprep.subr.mxu0 0.0
  %486 = vmatpush1.msra.mxu0 0.0
  %487 = vmatprep.subr.mxu0 0.0
  %488 = vmatpush1.msra.mxu0 0.0
  %489 = vmatprep.subr.mxu0 0.0
  %490 = vmatpush1.msra.mxu0 0.0
  %491 = vmatprep.subr.mxu0 0.0
  %492 = vmatpush1.msra.mxu0 0.0
  %493 = vmatprep.subr.mxu0 0.0
  %494 = vmatpush1.msra.mxu0 0.0
  %495 = vmatprep.subr.mxu0 0.0
  %496 = vmatpush1.msra.mxu0 0.0
  %497 = vmatprep.subr.mxu0 0.0
  %498 = vmatpush1.msra.mxu0 0.0
  %499 = vmatprep.subr.mxu0 0.0
  %500 = vmatpush1.msra.mxu0 0.0
  %501 = vmatprep.subr.mxu0 0.0
  %502 = vmatpush1.msra.mxu0 0.0
  %503 = vmatprep.subr.mxu0 0.0
  %504 = vmatpush1.msra.mxu0 0.0
  %505 = vmatprep.subr.mxu0 0.0
  %506 = vmatpush1.msra.mxu0 0.0
  %507 = vmatprep.subr.mxu0 0.0
  %508 = vmatpush1.msra.mxu0 0.0
  %509 = vmatprep.subr.mxu0 0.0
  %510 = vmatpush1.msra.mxu0 0.0
  %511 = vmatprep.subr.mxu0 0.0
  %512 = vmatpush1.msra.mxu0 0.0
  %513 = vmatprep.subr.mxu0 0.0
  %514 = vmatpush1.msra.mxu0 0.0
  %515 = vmatprep.mubr.f32.mxu0 0.0
  %516 = vmatmul.mubr.f32.gmra.mrb[0].mxu0 %v101
  %v517 = vpop.f32.mrb[0].mxu0
  %v518 = vadd.f32 0.0, %v517
  %v519 = vpop.f32.mrb[0].mxu0
  %v520 = vadd.f32 0.0, %v519
  %521 = vdwg.mxu0
  %522 = vmatprep.subr.mxu0 %v26
  %523 = vmatpush1.msra.mxu0 %v25
  %524 = vmatprep.subr.mxu0 %v47
  %525 = vmatpush1.msra.mxu0 %v46
  %526 = vmatprep.subr.mxu0 %v68
  %527 = vmatpush1.msra.mxu0 %v67
  %528 = vmatprep.subr.mxu0 %v138
  %529 = vmatpush1.msra.mxu0 %v135
  %530 = vmatprep.subr.mxu0 0.0
  %531 = vmatpush1.msra.mxu0 0.0
  %532 = vmatprep.subr.mxu0 0.0
  %533 = vmatpush1.msra.mxu0 0.0
  %534 = vmatprep.subr.mxu0 0.0
  %535 = vmatpush1.msra.mxu0 0.0
  %536 = vmatprep.subr.mxu0 0.0
  %537 = vmatpush1.msra.mxu0 0.0
  %538 = vmatprep.subr.mxu0 0.0
  %539 = vmatpush1.msra.mxu0 0.0
  %540 = vmatprep.subr.mxu0 0.0
  %541 = vmatpush1.msra.mxu0 0.0
  %542 = vmatprep.subr.mxu0 0.0
  %543 = vmatpush1.msra.mxu0 0.0
  %544 = vmatprep.subr.mxu0 0.0
  %545 = vmatpush1.msra.mxu0 0.0
  %546 = vmatprep.subr.mxu0 0.0
  %547 = vmatpush1.msra.mxu0 0.0
  %548 = vmatprep.subr.mxu0 0.0
  %549 = vmatpush1.msra.mxu0 0.0
  %550 = vmatprep.subr.mxu0 0.0
  %551 = vmatpush1.msra.mxu0 0.0
  %552 = vmatprep.subr.mxu0 0.0
  %553 = vmatpush1.msra.mxu0 0.0
  %554 = vmatprep.subr.mxu0 0.0
  %555 = vmatpush1.msra.mxu0 0.0
  %556 = vmatprep.subr.mxu0 0.0
  %557 = vmatpush1.msra.mxu0 0.0
  %558 = vmatprep.subr.mxu0 0.0
  %559 = vmatpush1.msra.mxu0 0.0
  %560 = vmatprep.subr.mxu0 0.0
  %561 = vmatpush1.msra.mxu0 0.0
  %562 = vmatprep.subr.mxu0 0.0
  %563 = vmatpush1.msra.mxu0 0.0
  %564 = vmatprep.subr.mxu0 0.0
  %565 = vmatpush1.msra.mxu0 0.0
  %566 = vmatprep.subr.mxu0 0.0
  %567 = vmatpush1.msra.mxu0 0.0
  %568 = vmatprep.subr.mxu0 0.0
  %569 = vmatpush1.msra.mxu0 0.0
  %570 = vmatprep.subr.mxu0 0.0
  %571 = vmatpush1.msra.mxu0 0.0
  %572 = vmatprep.subr.mxu0 0.0
  %573 = vmatpush1.msra.mxu0 0.0
  %574 = vmatprep.subr.mxu0 0.0
  %575 = vmatpush1.msra.mxu0 0.0
  %576 = vmatprep.subr.mxu0 0.0
  %577 = vmatpush1.msra.mxu0 0.0
  %578 = vmatprep.subr.mxu0 0.0
  %579 = vmatpush1.msra.mxu0 0.0
  %580 = vmatprep.subr.mxu0 0.0
  %581 = vmatpush1.msra.mxu0 0.0
  %582 = vmatprep.subr.mxu0 0.0
  %583 = vmatpush1.msra.mxu0 0.0
  %584 = vmatprep.subr.mxu0 0.0
  %585 = vmatpush1.msra.mxu0 0.0
  %586 = vmatprep.mubr.f32.mxu0 0.0
  %587 = vmatmul.mubr.f32.gmra.mrb[0].mxu0 %v101
  %v588 = vpop.f32.mrb[0].mxu0
  %v589 = vadd.f32 0.0, %v588
  %v590 = vpop.f32.mrb[0].mxu0
  %v591 = vadd.f32 0.0, %v590
  %592 = vdwg.mxu0
  %593 = vmatprep.subr.mxu0 %v28
  %594 = vmatpush1.msra.mxu0 %v27
  %595 = vmatprep.subr.mxu0 %v49
  %596 = vmatpush1.msra.mxu0 %v48
  %597 = vmatprep.subr.mxu0 %v70
  %598 = vmatpush1.msra.mxu0 %v69
  %599 = vmatprep.subr.mxu0 %v144
  %600 = vmatpush1.msra.mxu0 %v141
  %601 = vmatprep.subr.mxu0 0.0
  %602 = vmatpush1.msra.mxu0 0.0
  %603 = vmatprep.subr.mxu0 0.0
  %604 = vmatpush1.msra.mxu0 0.0
  %605 = vmatprep.subr.mxu0 0.0
  %606 = vmatpush1.msra.mxu0 0.0
  %607 = vmatprep.subr.mxu0 0.0
  %608 = vmatpush1.msra.mxu0 0.0
  %609 = vmatprep.subr.mxu0 0.0
  %610 = vmatpush1.msra.mxu0 0.0
  %611 = vmatprep.subr.mxu0 0.0
  %612 = vmatpush1.msra.mxu0 0.0
  %613 = vmatprep.subr.mxu0 0.0
  %614 = vmatpush1.msra.mxu0 0.0
  %615 = vmatprep.subr.mxu0 0.0
  %616 = vmatpush1.msra.mxu0 0.0
  %617 = vmatprep.subr.mxu0 0.0
  %618 = vmatpush1.msra.mxu0 0.0
  %619 = vmatprep.subr.mxu0 0.0
  %620 = vmatpush1.msra.mxu0 0.0
  %621 = vmatprep.subr.mxu0 0.0
  %622 = vmatpush1.msra.mxu0 0.0
  %623 = vmatprep.subr.mxu0 0.0
  %624 = vmatpush1.msra.mxu0 0.0
  %625 = vmatprep.subr.mxu0 0.0
  %626 = vmatpush1.msra.mxu0 0.0
  %627 = vmatprep.subr.mxu0 0.0
  %628 = vmatpush1.msra.mxu0 0.0
  %629 = vmatprep.subr.mxu0 0.0
  %630 = vmatpush1.msra.mxu0 0.0
  %631 = vmatprep.subr.mxu0 0.0
  %632 = vmatpush1.msra.mxu0 0.0
  %633 = vmatprep.subr.mxu0 0.0
  %634 = vmatpush1.msra.mxu0 0.0
  %635 = vmatprep.subr.mxu0 0.0
  %636 = vmatpush1.msra.mxu0 0.0
  %637 = vmatprep.subr.mxu0 0.0
  %638 = vmatpush1.msra.mxu0 0.0
  %639 = vmatprep.subr.mxu0 0.0
  %640 = vmatpush1.msra.mxu0 0.0
  %641 = vmatprep.subr.mxu0 0.0
  %642 = vmatpush1.msra.mxu0 0.0
  %643 = vmatprep.subr.mxu0 0.0
  %644 = vmatpush1.msra.mxu0 0.0
  %645 = vmatprep.subr.mxu0 0.0
  %646 = vmatpush1.msra.mxu0 0.0
  %647 = vmatprep.subr.mxu0 0.0
  %648 = vmatpush1.msra.mxu0 0.0
  %649 = vmatprep.subr.mxu0 0.0
  %650 = vmatpush1.msra.mxu0 0.0
  %651 = vmatprep.subr.mxu0 0.0
  %652 = vmatpush1.msra.mxu0 0.0
  %653 = vmatprep.subr.mxu0 0.0
  %654 = vmatpush1.msra.mxu0 0.0
  %655 = vmatprep.subr.mxu0 0.0
  %656 = vmatpush1.msra.mxu0 0.0
  %657 = vmatprep.mubr.f32.mxu0 0.0
  %658 = vmatmul.mubr.f32.gmra.mrb[0].mxu0 %v101
  %v659 = vpop.f32.mrb[0].mxu0
  %v660 = vadd.f32 0.0, %v659
  %v661 = vpop.f32.mrb[0].mxu0
  %v662 = vadd.f32 0.0, %v661
  %663 = vdwg.mxu0
  %664 = vmatprep.subr.mxu0 %v30
  %665 = vmatpush1.msra.mxu0 %v29
  %666 = vmatprep.subr.mxu0 %v51
  %667 = vmatpush1.msra.mxu0 %v50
  %668 = vmatprep.subr.mxu0 %v72
  %669 = vmatpush1.msra.mxu0 %v71
  %670 = vmatprep.subr.mxu0 %v150
  %671 = vmatpush1.msra.mxu0 %v147
  %672 = vmatprep.subr.mxu0 0.0
  %673 = vmatpush1.msra.mxu0 0.0
  %674 = vmatprep.subr.mxu0 0.0
  %675 = vmatpush1.msra.mxu0 0.0
  %676 = vmatprep.subr.mxu0 0.0
  %677 = vmatpush1.msra.mxu0 0.0
  %678 = vmatprep.subr.mxu0 0.0
  %679 = vmatpush1.msra.mxu0 0.0
  %680 = vmatprep.subr.mxu0 0.0
  %681 = vmatpush1.msra.mxu0 0.0
  %682 = vmatprep.subr.mxu0 0.0
  %683 = vmatpush1.msra.mxu0 0.0
  %684 = vmatprep.subr.mxu0 0.0
  %685 = vmatpush1.msra.mxu0 0.0
  %686 = vmatprep.subr.mxu0 0.0
  %687 = vmatpush1.msra.mxu0 0.0
  %688 = vmatprep.subr.mxu0 0.0
  %689 = vmatpush1.msra.mxu0 0.0
  %690 = vmatprep.subr.mxu0 0.0
  %691 = vmatpush1.msra.mxu0 0.0
  %692 = vmatprep.subr.mxu0 0.0
  %693 = vmatpush1.msra.mxu0 0.0
  %694 = vmatprep.subr.mxu0 0.0
  %695 = vmatpush1.msra.mxu0 0.0
  %696 = vmatprep.subr.mxu0 0.0
  %697 = vmatpush1.msra.mxu0 0.0
  %698 = vmatprep.subr.mxu0 0.0
  %699 = vmatpush1.msra.mxu0 0.0
  %700 = vmatprep.subr.mxu0 0.0
  %701 = vmatpush1.msra.mxu0 0.0
  %702 = vmatprep.subr.mxu0 0.0
  %703 = vmatpush1.msra.mxu0 0.0
  %704 = vmatprep.subr.mxu0 0.0
  %705 = vmatpush1.msra.mxu0 0.0
  %706 = vmatprep.subr.mxu0 0.0
  %707 = vmatpush1.msra.mxu0 0.0
  %708 = vmatprep.subr.mxu0 0.0
  %709 = vmatpush1.msra.mxu0 0.0
  %710 = vmatprep.subr.mxu0 0.0
  %711 = vmatpush1.msra.mxu0 0.0
  %712 = vmatprep.subr.mxu0 0.0
  %713 = vmatpush1.msra.mxu0 0.0
  %714 = vmatprep.subr.mxu0 0.0
  %715 = vmatpush1.msra.mxu0 0.0
  %716 = vmatprep.subr.mxu0 0.0
  %717 = vmatpush1.msra.mxu0 0.0
  %718 = vmatprep.subr.mxu0 0.0
  %719 = vmatpush1.msra.mxu0 0.0
  %720 = vmatprep.subr.mxu0 0.0
  %721 = vmatpush1.msra.mxu0 0.0
  %722 = vmatprep.subr.mxu0 0.0
  %723 = vmatpush1.msra.mxu0 0.0
  %724 = vmatprep.subr.mxu0 0.0
  %725 = vmatpush1.msra.mxu0 0.0
  %726 = vmatprep.subr.mxu0 0.0
  %727 = vmatpush1.msra.mxu0 0.0
  %728 = vmatprep.mubr.f32.mxu0 0.0
  %729 = vmatmul.mubr.f32.gmra.mrb[0].mxu0 %v101
  %v730 = vpop.f32.mrb[0].mxu0
  %v731 = vadd.f32 0.0, %v730
  %v732 = vpop.f32.mrb[0].mxu0
  %v733 = vadd.f32 0.0, %v732
  %734 = vdwg.mxu0
  %735 = vmatprep.subr.mxu0 %v32
  %736 = vmatpush1.msra.mxu0 %v31
  %737 = vmatprep.subr.mxu0 %v53
  %738 = vmatpush1.msra.mxu0 %v52
  %739 = vmatprep.subr.mxu0 %v74
  %740 = vmatpush1.msra.mxu0 %v73
  %741 = vmatprep.subr.mxu0 %v156
  %742 = vmatpush1.msra.mxu0 %v153
  %743 = vmatprep.subr.mxu0 0.0
  %744 = vmatpush1.msra.mxu0 0.0
  %745 = vmatprep.subr.mxu0 0.0
  %746 = vmatpush1.msra.mxu0 0.0
  %747 = vmatprep.subr.mxu0 0.0
  %748 = vmatpush1.msra.mxu0 0.0
  %749 = vmatprep.subr.mxu0 0.0
  %750 = vmatpush1.msra.mxu0 0.0
  %751 = vmatprep.subr.mxu0 0.0
  %752 = vmatpush1.msra.mxu0 0.0
  %753 = vmatprep.subr.mxu0 0.0
  %754 = vmatpush1.msra.mxu0 0.0
  %755 = vmatprep.subr.mxu0 0.0
  %756 = vmatpush1.msra.mxu0 0.0
  %757 = vmatprep.subr.mxu0 0.0
  %758 = vmatpush1.msra.mxu0 0.0
  %759 = vmatprep.subr.mxu0 0.0
  %760 = vmatpush1.msra.mxu0 0.0
  %761 = vmatprep.subr.mxu0 0.0
  %762 = vmatpush1.msra.mxu0 0.0
  %763 = vmatprep.subr.mxu0 0.0
  %764 = vmatpush1.msra.mxu0 0.0
  %765 = vmatprep.subr.mxu0 0.0
  %766 = vmatpush1.msra.mxu0 0.0
  %767 = vmatprep.subr.mxu0 0.0
  %768 = vmatpush1.msra.mxu0 0.0
  %769 = vmatprep.subr.mxu0 0.0
  %770 = vmatpush1.msra.mxu0 0.0
  %771 = vmatprep.subr.mxu0 0.0
  %772 = vmatpush1.msra.mxu0 0.0
  %773 = vmatprep.subr.mxu0 0.0
  %774 = vmatpush1.msra.mxu0 0.0
  %775 = vmatprep.subr.mxu0 0.0
  %776 = vmatpush1.msra.mxu0 0.0
  %777 = vmatprep.subr.mxu0 0.0
  %778 = vmatpush1.msra.mxu0 0.0
  %779 = vmatprep.subr.mxu0 0.0
  %780 = vmatpush1.msra.mxu0 0.0
  %781 = vmatprep.subr.mxu0 0.0
  %782 = vmatpush1.msra.mxu0 0.0
  %783 = vmatprep.subr.mxu0 0.0
  %784 = vmatpush1.msra.mxu0 0.0
  %785 = vmatprep.subr.mxu0 0.0
  %786 = vmatpush1.msra.mxu0 0.0
  %787 = vmatprep.subr.mxu0 0.0
  %788 = vmatpush1.msra.mxu0 0.0
  %789 = vmatprep.subr.mxu0 0.0
  %790 = vmatpush1.msra.mxu0 0.0
  %791 = vmatprep.subr.mxu0 0.0
  %792 = vmatpush1.msra.mxu0 0.0
  %793 = vmatprep.subr.mxu0 0.0
  %794 = vmatpush1.msra.mxu0 0.0
  %795 = vmatprep.subr.mxu0 0.0
  %796 = vmatpush1.msra.mxu0 0.0
  %797 = vmatprep.subr.mxu0 0.0
  %798 = vmatpush1.msra.mxu0 0.0
  %799 = vmatprep.mubr.f32.mxu0 0.0
  %800 = vmatmul.mubr.f32.gmra.mrb[0].mxu0 %v101
  %v801 = vpop.f32.mrb[0].mxu0
  %v802 = vadd.f32 0.0, %v801
  %v803 = vpop.f32.mrb[0].mxu0
  %v804 = vadd.f32 0.0, %v803
  %805 = vdwg.mxu0
  %806 = vmatprep.subr.mxu0 %v34
  %807 = vmatpush1.msra.mxu0 %v33
  %808 = vmatprep.subr.mxu0 %v55
  %809 = vmatpush1.msra.mxu0 %v54
  %810 = vmatprep.subr.mxu0 %v76
  %811 = vmatpush1.msra.mxu0 %v75
  %812 = vmatprep.subr.mxu0 %v162
  %813 = vmatpush1.msra.mxu0 %v159
  %814 = vmatprep.subr.mxu0 0.0
  %815 = vmatpush1.msra.mxu0 0.0
  %816 = vmatprep.subr.mxu0 0.0
  %817 = vmatpush1.msra.mxu0 0.0
  %818 = vmatprep.subr.mxu0 0.0
  %819 = vmatpush1.msra.mxu0 0.0
  %820 = vmatprep.subr.mxu0 0.0
  %821 = vmatpush1.msra.mxu0 0.0
  %822 = vmatprep.subr.mxu0 0.0
  %823 = vmatpush1.msra.mxu0 0.0
  %824 = vmatprep.subr.mxu0 0.0
  %825 = vmatpush1.msra.mxu0 0.0
  %826 = vmatprep.subr.mxu0 0.0
  %827 = vmatpush1.msra.mxu0 0.0
  %828 = vmatprep.subr.mxu0 0.0
  %829 = vmatpush1.msra.mxu0 0.0
  %830 = vmatprep.subr.mxu0 0.0
  %831 = vmatpush1.msra.mxu0 0.0
  %832 = vmatprep.subr.mxu0 0.0
  %833 = vmatpush1.msra.mxu0 0.0
  %834 = vmatprep.subr.mxu0 0.0
  %835 = vmatpush1.msra.mxu0 0.0
  %836 = vmatprep.subr.mxu0 0.0
  %837 = vmatpush1.msra.mxu0 0.0
  %838 = vmatprep.subr.mxu0 0.0
  %839 = vmatpush1.msra.mxu0 0.0
  %840 = vmatprep.subr.mxu0 0.0
  %841 = vmatpush1.msra.mxu0 0.0
  %842 = vmatprep.subr.mxu0 0.0
  %843 = vmatpush1.msra.mxu0 0.0
  %844 = vmatprep.subr.mxu0 0.0
  %845 = vmatpush1.msra.mxu0 0.0
  %846 = vmatprep.subr.mxu0 0.0
  %847 = vmatpush1.msra.mxu0 0.0
  %848 = vmatprep.subr.mxu0 0.0
  %849 = vmatpush1.msra.mxu0 0.0
  %850 = vmatprep.subr.mxu0 0.0
  %851 = vmatpush1.msra.mxu0 0.0
  %852 = vmatprep.subr.mxu0 0.0
  %853 = vmatpush1.msra.mxu0 0.0
  %854 = vmatprep.subr.mxu0 0.0
  %855 = vmatpush1.msra.mxu0 0.0
  %856 = vmatprep.subr.mxu0 0.0
  %857 = vmatpush1.msra.mxu0 0.0
  %858 = vmatprep.subr.mxu0 0.0
  %859 = vmatpush1.msra.mxu0 0.0
  %860 = vmatprep.subr.mxu0 0.0
  %861 = vmatpush1.msra.mxu0 0.0
  %862 = vmatprep.subr.mxu0 0.0
  %863 = vmatpush1.msra.mxu0 0.0
  %864 = vmatprep.subr.mxu0 0.0
  %865 = vmatpush1.msra.mxu0 0.0
  %866 = vmatprep.subr.mxu0 0.0
  %867 = vmatpush1.msra.mxu0 0.0
  %868 = vmatprep.subr.mxu0 0.0
  %869 = vmatpush1.msra.mxu0 0.0
  %870 = vmatprep.mubr.f32.mxu0 0.0
  %871 = vmatmul.mubr.f32.gmra.mrb[0].mxu0 %v101
  %v872 = vpop.f32.mrb[0].mxu0
  %v873 = vadd.f32 0.0, %v872
  %v874 = vpop.f32.mrb[0].mxu0
  %v875 = vadd.f32 0.0, %v874
  %876 = vdwg.mxu0
  %877 = vmatprep.subr.mxu0 0.0
  %878 = vmatpush1.msra.mxu0 %v35
  %879 = vmatprep.subr.mxu0 0.0
  %880 = vmatpush1.msra.mxu0 %v56
  %881 = vmatprep.subr.mxu0 0.0
  %882 = vmatpush1.msra.mxu0 %v77
  %883 = vmatprep.subr.mxu0 0.0
  %884 = vmatpush1.msra.mxu0 %v165
  %885 = vmatprep.subr.mxu0 0.0
  %886 = vmatpush1.msra.mxu0 0.0
  %887 = vmatprep.subr.mxu0 0.0
  %888 = vmatpush1.msra.mxu0 0.0
  %889 = vmatprep.subr.mxu0 0.0
  %890 = vmatpush1.msra.mxu0 0.0
  %891 = vmatprep.subr.mxu0 0.0
  %892 = vmatpush1.msra.mxu0 0.0
  %893 = vmatprep.subr.mxu0 0.0
  %894 = vmatpush1.msra.mxu0 0.0
  %895 = vmatprep.subr.mxu0 0.0
  %896 = vmatpush1.msra.mxu0 0.0
  %897 = vmatprep.subr.mxu0 0.0
  %898 = vmatpush1.msra.mxu0 0.0
  %899 = vmatprep.subr.mxu0 0.0
  %900 = vmatpush1.msra.mxu0 0.0
  %901 = vmatprep.subr.mxu0 0.0
  %902 = vmatpush1.msra.mxu0 0.0
  %903 = vmatprep.subr.mxu0 0.0
  %904 = vmatpush1.msra.mxu0 0.0
  %905 = vmatprep.subr.mxu0 0.0
  %906 = vmatpush1.msra.mxu0 0.0
  %907 = vmatprep.subr.mxu0 0.0
  %908 = vmatpush1.msra.mxu0 0.0
  %909 = vmatprep.subr.mxu0 0.0
  %910 = vmatpush1.msra.mxu0 0.0
  %911 = vmatprep.subr.mxu0 0.0
  %912 = vmatpush1.msra.mxu0 0.0
  %913 = vmatprep.subr.mxu0 0.0
  %914 = vmatpush1.msra.mxu0 0.0
  %915 = vmatprep.subr.mxu0 0.0
  %916 = vmatpush1.msra.mxu0 0.0
  %917 = vmatprep.subr.mxu0 0.0
  %918 = vmatpush1.msra.mxu0 0.0
  %919 = vmatprep.subr.mxu0 0.0
  %920 = vmatpush1.msra.mxu0 0.0
  %921 = vmatprep.subr.mxu0 0.0
  %922 = vmatpush1.msra.mxu0 0.0
  %923 = vmatprep.subr.mxu0 0.0
  %924 = vmatpush1.msra.mxu0 0.0
  %925 = vmatprep.subr.mxu0 0.0
  %926 = vmatpush1.msra.mxu0 0.0
  %927 = vmatprep.subr.mxu0 0.0
  %928 = vmatpush1.msra.mxu0 0.0
  %929 = vmatprep.subr.mxu0 0.0
  %930 = vmatpush1.msra.mxu0 0.0
  %931 = vmatprep.subr.mxu0 0.0
  %932 = vmatpush1.msra.mxu0 0.0
  %933 = vmatprep.subr.mxu0 0.0
  %934 = vmatpush1.msra.mxu0 0.0
  %935 = vmatprep.subr.mxu0 0.0
  %936 = vmatpush1.msra.mxu0 0.0
  %937 = vmatprep.subr.mxu0 0.0
  %938 = vmatpush1.msra.mxu0 0.0
  %939 = vmatprep.subr.mxu0 0.0
  %940 = vmatpush1.msra.mxu0 0.0
  %941 = vmatprep.mubr.f32.mxu0 0.0
  %942 = vmatmul.mubr.f32.gmra.mrb[0].mxu0 %v101
  %v943 = vpop.f32.mrb[0].mxu0
  %v944 = vadd.f32 0.0, %v943
  %v945 = vpop.f32.mrb[0].mxu0
  %946 = vdwg.mxu0
  %vm947 = vcmask 1043456
  %v948 = vsel %vm947, %v234, 0.0
  %v949 = vsel %vm947, %v236, 0.0
  %v950 = vadd.f32 %v948, %v949
  %v951 = vsel %vm947, %v305, 0.0
  %v952 = vadd.f32 %v950, %v951
  %v953 = vsel %vm947, %v307, 0.0
  %v954 = vadd.f32 %v952, %v953
  %v955 = vsel %vm947, %v376, 0.0
  %v956 = vadd.f32 %v954, %v955
  %v957 = vsel %vm947, %v378, 0.0
  %v958 = vadd.f32 %v956, %v957
  %v959 = vsel %vm947, %v447, 0.0
  %v960 = vadd.f32 %v958, %v959
  %v961 = vsel %vm947, %v449, 0.0
  %v962 = vadd.f32 %v960, %v961
  %v963 = vsel %vm947, %v518, 0.0
  %v964 = vadd.f32 %v962, %v963
  %v965 = vsel %vm947, %v520, 0.0
  %v966 = vadd.f32 %v964, %v965
  %v967 = vsel %vm947, %v589, 0.0
  %v968 = vadd.f32 %v966, %v967
  %v969 = vsel %vm947, %v591, 0.0
  %v970 = vadd.f32 %v968, %v969
  %v971 = vsel %vm947, %v660, 0.0
  %v972 = vadd.f32 %v970, %v971
  %v973 = vsel %vm947, %v662, 0.0
  %v974 = vadd.f32 %v972, %v973
  %v975 = vsel %vm947, %v731, 0.0
  %v976 = vadd.f32 %v974, %v975
  %v977 = vsel %vm947, %v733, 0.0
  %v978 = vadd.f32 %v976, %v977
  %v979 = vsel %vm947, %v802, 0.0
  %v980 = vadd.f32 %v978, %v979
  %v981 = vsel %vm947, %v804, 0.0
  %v982 = vadd.f32 %v980, %v981
  %v983 = vsel %vm947, %v873, 0.0
  %v984 = vadd.f32 %v982, %v983
  %v985 = vsel %vm947, %v875, 0.0
  %v986 = vadd.f32 %v984, %v985
  %vm987 = vcmask 257024
  %v988 = vsel %vm987, %v944, 0.0
  %v989 = vadd.f32 %v986, %v988
  %990 = vadd.xlane.f32.xlu0 %v989
  %v991 = vpop.xlane.xlu0 %990
  %v992 = vrcp.pop 2592.0
  %v993 = vmul.f32 %v991, %v992
  %v994 = vsub.f32 %v234, %v993
  %v995 = vsub.f32 %v236, %v993
  %v996 = vsub.f32 %v305, %v993
  %v997 = vsub.f32 %v307, %v993
  %v998 = vsub.f32 %v376, %v993
  %v999 = vsub.f32 %v378, %v993
  %v1000 = vsub.f32 %v447, %v993
  %v1001 = vsub.f32 %v449, %v993
  %v1002 = vsub.f32 %v518, %v993
  %v1003 = vsub.f32 %v520, %v993
  %v1004 = vsub.f32 %v589, %v993
  %v1005 = vsub.f32 %v591, %v993
  %v1006 = vsub.f32 %v660, %v993
  %v1007 = vsub.f32 %v662, %v993
  %v1008 = vsub.f32 %v731, %v993
  %v1009 = vsub.f32 %v733, %v993
  %v1010 = vsub.f32 %v802, %v993
  %v1011 = vsub.f32 %v804, %v993
  %v1012 = vsub.f32 %v873, %v993
  %v1013 = vsub.f32 %v875, %v993
  %v1014 = vsub.f32 %v944, %v993
  %v1015 = vmul.f32 %v994, %v994
  %v1016 = vmul.f32 %v995, %v995
  %v1017 = vmul.f32 %v996, %v996
  %v1018 = vmul.f32 %v997, %v997
  %v1019 = vmul.f32 %v998, %v998
  %v1020 = vmul.f32 %v999, %v999
  %v1021 = vmul.f32 %v1000, %v1000
  %v1022 = vmul.f32 %v1001, %v1001
  %v1023 = vmul.f32 %v1002, %v1002
  %v1024 = vmul.f32 %v1003, %v1003
  %v1025 = vmul.f32 %v1004, %v1004
  %v1026 = vmul.f32 %v1005, %v1005
  %v1027 = vmul.f32 %v1006, %v1006
  %v1028 = vmul.f32 %v1007, %v1007
  %v1029 = vmul.f32 %v1008, %v1008
  %v1030 = vmul.f32 %v1009, %v1009
  %v1031 = vmul.f32 %v1010, %v1010
  %v1032 = vmul.f32 %v1011, %v1011
  %v1033 = vmul.f32 %v1012, %v1012
  %v1034 = vmul.f32 %v1013, %v1013
  %v1035 = vmul.f32 %v1014, %v1014
  %v1036 = vsel %vm947, %v1015, 0.0
  %v1037 = vsel %vm947, %v1016, 0.0
  %v1038 = vadd.f32 %v1036, %v1037
  %v1039 = vsel %vm947, %v1017, 0.0
  %v1040 = vadd.f32 %v1038, %v1039
  %v1041 = vsel %vm947, %v1018, 0.0
  %v1042 = vadd.f32 %v1040, %v1041
  %v1043 = vsel %vm947, %v1019, 0.0
  %v1044 = vadd.f32 %v1042, %v1043
  %v1045 = vsel %vm947, %v1020, 0.0
  %v1046 = vadd.f32 %v1044, %v1045
  %v1047 = vsel %vm947, %v1021, 0.0
  %v1048 = vadd.f32 %v1046, %v1047
  %v1049 = vsel %vm947, %v1022, 0.0
  %v1050 = vadd.f32 %v1048, %v1049
  %v1051 = vsel %vm947, %v1023, 0.0
  %v1052 = vadd.f32 %v1050, %v1051
  %v1053 = vsel %vm947, %v1024, 0.0
  %v1054 = vadd.f32 %v1052, %v1053
  %v1055 = vsel %vm947, %v1025, 0.0
  %v1056 = vadd.f32 %v1054, %v1055
  %v1057 = vsel %vm947, %v1026, 0.0
  %v1058 = vadd.f32 %v1056, %v1057
  %v1059 = vsel %vm947, %v1027, 0.0
  %v1060 = vadd.f32 %v1058, %v1059
  %v1061 = vsel %vm947, %v1028, 0.0
  %v1062 = vadd.f32 %v1060, %v1061
  %v1063 = vsel %vm947, %v1029, 0.0
  %v1064 = vadd.f32 %v1062, %v1063
  %v1065 = vsel %vm947, %v1030, 0.0
  %v1066 = vadd.f32 %v1064, %v1065
  %v1067 = vsel %vm947, %v1031, 0.0
  %v1068 = vadd.f32 %v1066, %v1067
  %v1069 = vsel %vm947, %v1032, 0.0
  %v1070 = vadd.f32 %v1068, %v1069
  %v1071 = vsel %vm947, %v1033, 0.0
  %v1072 = vadd.f32 %v1070, %v1071
  %v1073 = vsel %vm947, %v1034, 0.0
  %v1074 = vadd.f32 %v1072, %v1073
  %v1075 = vsel %vm987, %v1035, 0.0
  %v1076 = vadd.f32 %v1074, %v1075
  %1077 = vadd.xlane.f32.xlu0 %v1076
  %v1078 = vpop.xlane.xlu0 %1077
  %v1079 = vmul.f32 %v1078, %v992
  %v1080 = vadd.f32 %v1079, 1e-05
  %v1081 = vrsqrt.pop %v1080
  %v1082 = vld [vmem:[%s2] sm:$0xf]
  %v1083 = vmul.f32 %v1081, %v1082
  %1085 = vset.pattern.permute.xlu0 0
  %1086 = vperm.xlu0 %1085, %v1083
  %v1087 = vpop.permute.xlu0 %1086
  %v1089 = vmul.f32 %v994, %v1087
  %v1090 = vmul.f32 %v995, %v1087
  %v1091 = vmul.f32 %v996, %v1087
  %v1092 = vmul.f32 %v997, %v1087
  %v1093 = vmul.f32 %v998, %v1087
  %v1094 = vmul.f32 %v999, %v1087
  %v1095 = vmul.f32 %v1000, %v1087
  %v1096 = vmul.f32 %v1001, %v1087
  %v1097 = vmul.f32 %v1002, %v1087
  %v1098 = vmul.f32 %v1003, %v1087
  %v1099 = vmul.f32 %v1004, %v1087
  %v1100 = vmul.f32 %v1005, %v1087
  %v1101 = vmul.f32 %v1006, %v1087
  %v1102 = vmul.f32 %v1007, %v1087
  %v1103 = vmul.f32 %v1008, %v1087
  %v1104 = vmul.f32 %v1009, %v1087
  %v1105 = vmul.f32 %v1010, %v1087
  %v1106 = vmul.f32 %v1011, %v1087
  %v1107 = vmul.f32 %v1012, %v1087
  %v1108 = vmul.f32 %v1013, %v1087
  %v1109 = vmul.f32 %v1014, %v1087
  %1111 = vset.pattern.permute.xlu0 1
  %1112 = vperm.xlu0 %1111, %v1082
  %v1113 = vpop.permute.xlu0 %1112
  %v1115 = vadd.f32 %v1089, %v1113
  %v1116 = vadd.f32 %v1090, %v1113
  %v1117 = vadd.f32 %v1091, %v1113
  %v1118 = vadd.f32 %v1092, %v1113
  %v1119 = vadd.f32 %v1093, %v1113
  %v1120 = vadd.f32 %v1094, %v1113
  %v1121 = vadd.f32 %v1095, %v1113
  %v1122 = vadd.f32 %v1096, %v1113
  %v1123 = vadd.f32 %v1097, %v1113
  %v1124 = vadd.f32 %v1098, %v1113
  %v1125 = vadd.f32 %v1099, %v1113
  %v1126 = vadd.f32 %v1100, %v1113
  %v1127 = vadd.f32 %v1101, %v1113
  %v1128 = vadd.f32 %v1102, %v1113
  %v1129 = vadd.f32 %v1103, %v1113
  %v1130 = vadd.f32 %v1104, %v1113
  %v1131 = vadd.f32 %v1105, %v1113
  %v1132 = vadd.f32 %v1106, %v1113
  %v1133 = vadd.f32 %v1107, %v1113
  %v1134 = vadd.f32 %v1108, %v1113
  %v1135 = vadd.f32 %v1109, %v1113
  %v1156 = vcombine.low %v1115, %v1116
  %v1157 = vcombine.low %v1117, %v1118
  %v1158 = vcombine.low %v1119, %v1120
  %v1159 = vcombine.low %v1121, %v1122
  %v1160 = vcombine.low %v1123, %v1124
  %v1161 = vcombine.low %v1125, %v1126
  %v1162 = vcombine.low %v1127, %v1128
  %v1163 = vcombine.low %v1129, %v1130
  %v1164 = vcombine.low %v1131, %v1132
  %v1165 = vcombine.low %v1133, %v1134
  %1176 = vst [vmem:[%s3] sm:$0xff] %v1156
  %1177 = vst [vmem:[%s3 + $0x8] sm:$0xff] %v1157
  %1178 = vst [vmem:[%s3 + $0x10] sm:$0xff] %v1158
  %1179 = vst [vmem:[%s3 + $0x18] sm:$0xff] %v1159
  %1180 = vst [vmem:[%s3 + $0x20] sm:$0xff] %v1160
  %1181 = vst [vmem:[%s3 + $0x28] sm:$0xff] %v1161
  %1182 = vst [vmem:[%s3 + $0x30] sm:$0xff] %v1162
  %1183 = vst [vmem:[%s3 + $0x38] sm:$0xff] %v1163
  %1184 = vst [vmem:[%s3 + $0x40] sm:$0xff] %v1164
  %1185 = vst [vmem:[%s3 + $0x48] sm:$0xff] %v1165
  %1186 = vst.msk [vmem:[%s3 + $0x50] sm:$0xf] %vm987, %v1135
  // Predicated region
  $region14: #{model_forward.3} parent=0 // pred_check
    _
  $region15: #{model_forward.3} parent=0 // pred_check_branch
    %1188 = sbr.rel (0) target = $region17
  $region16: #{model_forward.3} parent=0 // pred_region
    _
  $region17: #{model_forward.3} parent=0 // pred_fallthru
    _
  // Predicated region
  $region18: #{model_forward.3} parent=0 // pred_check
    _
  $region19: #{model_forward.3} parent=0 // pred_check_branch
    %1190 = sbr.rel (0) target = $region21
  $region20: #{model_forward.3} parent=0 // pred_region
    _
  $region21: #{model_forward.3} parent=0 // pred_fallthru
    _

</llo_original>
